<compile_context>
chip_gen: v5e
topology: v5e:2x2
jax: 0.10.0
libtpu: 0.0.40
codegen_flags: <defaults>
</compile_context>

<pallas_src>
import functools
import math

import jax
import jax.numpy as jnp
from jax import lax
from jax.experimental import pallas as pl
from jax.experimental.pallas import tpu as pltpu


_PAD = 8  # tail pad rows per image in the flattened (H*W + _PAD, C) activation


def _round_up(x, m):
    return (x + m - 1) // m * m


def _vmem_limit(need_bytes):
    """Per-generation VMEM request: enough for this kernel (x2 + headroom),
    floored at the default scoped limit, capped at ~3/4 of physical VMEM
    (64 MiB on v7x, 128 MiB on v5e/v6e)."""
    try:
        cap = int(getattr(pltpu.get_tpu_info(), "vmem_capacity_bytes",
                          128 * 1024 * 1024))
    except Exception:
        cap = 128 * 1024 * 1024
    want = max(2 * int(need_bytes) + (16 << 20), 32 << 20)
    return int(min(want, cap * 3 // 4))


def _resident(shape):
    """Full-array block with a constant index_map (stays resident in VMEM).
    Single-buffered (no wasted double buffer) when pipeline_mode is available."""
    nd = len(shape)
    idx = lambda *_: (0,) * nd
    try:
        return pl.BlockSpec(shape, idx, pipeline_mode=pl.Buffered(1))
    except (TypeError, AttributeError):  # older Pallas without pipeline_mode
        return pl.BlockSpec(shape, idx)


def _images_per_block(batch):
    """Images per conv grid step: keep >= 2 grid steps (megacore) and divide B."""
    for bt in (4, 2, 1):
        if batch % bt == 0 and batch // bt >= 2:
            return bt
    return batch  # batch == 1


def _fc_k_tiling(flat_dim):
    """(tk, flat_pad) for the head's K-tiled fc matmul (zero-padded K)."""
    if flat_dim > 2048:
        return 2048, _round_up(flat_dim, 2048)
    tk = _round_up(flat_dim, 128)
    return tk, tk


# ----------------------------------------------------------------------------
# Pallas kernels
# ----------------------------------------------------------------------------
def _conv0_kernel(x_ref, w_ref, b_ref, o_ref, *, m_chunk):
    """First conv (stride 2) as a dense im2col matmul per image.

    x:(Bt, M0, 9*C) bf16, w:(9*C, F) bf16 (obs/255 folded), b:(1, F) f32,
    o:(Bt, M0+_PAD, F) bf16.  The _PAD tail rows are zeroed so downstream
    tap reads into the pad stay finite."""
    bt, m_rows, _ = x_ref.shape
    f = o_ref.shape[2]
    for bi in range(bt):
        for m0 in range(0, m_rows, m_chunk):
            ml = min(m_chunk, m_rows - m0)
            acc = jnp.dot(x_ref[bi, m0:m0 + ml, :], w_ref[...],
                          preferred_element_type=jnp.float32)
            o_ref[bi, m0:m0 + ml, :] = jnp.maximum(
                acc + b_ref[...], 0.0).astype(o_ref.dtype)
        o_ref[bi, m_rows:, :] = jnp.zeros((_PAD, f), o_ref.dtype)


def _conv3x3_s1_kernel(x_ref, w_ref, b_ref, o_ref, *, row_pitch, m_chunk):
    """3x3 stride-1 conv with in-kernel im2col: 9 shifted accumulated matmuls
    on the spatially flattened activation (no HBM patch blow-up).

    x:(Bt, Hs*Ws+_PAD, C) bf16 (flattened per image, row pitch Ws),
    w:(9, C, F) bf16 taps, b:(1, F) f32, o:(Bt, (Hs-2)*Ws+_PAD, F) bf16.
    Output rows whose column index >= valid width are wrap-around garbage by
    construction; the wrapper tracks and strips them before the fc."""
    bt = x_ref.shape[0]
    f = o_ref.shape[2]
    mc = o_ref.shape[1] - _PAD                      # (Hs-2)*Ws computed rows
    offs = [ki * row_pitch + kj for ki in range(3) for kj in range(3)]
    for bi in range(bt):
        for m0 in range(0, mc, m_chunk):
            ml = min(m_chunk, mc - m0)
            acc = jnp.zeros((ml, f), jnp.float32)
            for t, off in enumerate(offs):
                acc = acc + jnp.dot(
                    x_ref[bi, m0 + off:m0 + off + ml, :], w_ref[t],
                    preferred_element_type=jnp.float32)
            o_ref[bi, m0:m0 + ml, :] = jnp.maximum(
                acc + b_ref[...], 0.0).astype(o_ref.dtype)
        o_ref[bi, mc:, :] = jnp.zeros((_PAD, f), o_ref.dtype)


def _head_kernel(h_ref, a_ref, wfc_ref, bfc_ref, g_ref, be_ref,
                 w1o1_ref, w1a1_ref, b11_ref, w21_ref, b21_ref, w31_ref, b31_ref,
                 w1o2_ref, w1a2_ref, b12_ref, w22_ref, b22_ref, w32_ref, b32_ref,
                 o_ref, acc_ref, *, eps):
    """K-tiled fc -> LayerNorm -> (concat action) -> Q1/Q2 trunks, fused.

    The fc contraction is accumulated over grid axis 1 into an f32 VMEM
    scratch; LN + both trunks run only on the last K step.  bf16 MXU
    operands, f32 accumulation and all VPU/LN math in f32 (v5e-safe)."""
    k = pl.program_id(1)

    @pl.when(k == 0)
    def _init():
        acc_ref[...] = jnp.zeros_like(acc_ref)

    acc_ref[...] += jnp.dot(h_ref[...], wfc_ref[...],
                            preferred_element_type=jnp.float32)

    @pl.when(k == pl.num_programs(1) - 1)
    def _finalize():
        z = acc_ref[...] + bfc_ref[...]
        mean = jnp.mean(z, axis=-1, keepdims=True)
        zc = z - mean
        var = jnp.mean(zc * zc, axis=-1, keepdims=True)
        fz = zc * lax.rsqrt(var + eps) * g_ref[...] + be_ref[...]
        fz_b = fz.astype(jnp.bfloat16)
        act_b = a_ref[...]

        def trunk(w1o, w1a, b1, w2, b2, w3, b3):
            # concat([feat, action]) realized as two matmuls on split weights
            h1 = (jnp.dot(fz_b, w1o[...], preferred_element_type=jnp.float32)
                  + jnp.dot(act_b, w1a[...], preferred_element_type=jnp.float32)
                  + b1[...])
            h1 = jnp.maximum(h1, 0.0).astype(jnp.bfloat16)
            h2 = jnp.dot(h1, w2[...], preferred_element_type=jnp.float32) + b2[...]
            h2 = jnp.maximum(h2, 0.0)
            # hidden -> 1 as a VPU weighted row-sum (no N=1 MXU pass)
            return jnp.sum(h2 * w3[...], axis=-1, keepdims=True) + b3[...]

        q1 = trunk(w1o1_ref, w1a1_ref, b11_ref, w21_ref, b21_ref, w31_ref, b31_ref)
        q2 = trunk(w1o2_ref, w1a2_ref, b12_ref, w22_ref, b22_ref, w32_ref, b32_ref)
        o_ref[:, 0:1] = q1
        o_ref[:, 1:2] = q2


# ----------------------------------------------------------------------------
# pallas_call wrappers
# ----------------------------------------------------------------------------
def pallas_conv0(patches, w, b, *, m_chunk=512):
    """patches:(B, M0, 9C) bf16 -> relu(patches@w+b):(B, M0+_PAD, F) bf16."""
    batch, m_rows, k = patches.shape
    f = w.shape[1]
    bt = _images_per_block(batch)
    grid = (batch // bt,)
    cost = pl.CostEstimate(
        flops=2 * batch * m_rows * k * f, transcendentals=0,
        bytes_accessed=2 * batch * m_rows * k + 2 * k * f
        + 2 * batch * (m_rows + _PAD) * f)
    need = 2 * (bt * m_rows * k * 2 + bt * (m_rows + _PAD) * f * 2) + k * f * 2
    return pl.pallas_call(
        functools.partial(_conv0_kernel, m_chunk=m_chunk),
        out_shape=jax.ShapeDtypeStruct((batch, m_rows + _PAD, f), jnp.bfloat16),
        grid=grid,
        in_specs=[pl.BlockSpec((bt, m_rows, k), lambda i: (i, 0, 0)),
                  _resident((k, f)),
                  _resident((1, f))],
        out_specs=pl.BlockSpec((bt, m_rows + _PAD, f), lambda i: (i, 0, 0)),
        compiler_params=pltpu.CompilerParams(
            dimension_semantics=("parallel",),
            vmem_limit_bytes=_vmem_limit(need)),
        cost_estimate=cost,
    )(patches, w, b)


def pallas_conv3x3_s1(x, w_taps, b, h_rows, row_pitch, *, m_chunk=512):
    """x:(B, Hs*Ws+_PAD, C) bf16 -> (B, (Hs-2)*Ws+_PAD, F) bf16, relu fused."""
    batch, rows_in, c = x.shape
    assert rows_in == h_rows * row_pitch + _PAD
    f = w_taps.shape[2]
    mc = (h_rows - 2) * row_pitch
    rows_out = mc + _PAD
    bt = _images_per_block(batch)
    grid = (batch // bt,)
    cost = pl.CostEstimate(
        flops=2 * batch * mc * 9 * c * f, transcendentals=0,
        bytes_accessed=2 * batch * rows_in * c + 2 * 9 * c * f
        + 2 * batch * rows_out * f)
    need = 2 * (bt * rows_in * c * 2 + bt * rows_out * f * 2) + 9 * c * f * 2
    return pl.pallas_call(
        functools.partial(_conv3x3_s1_kernel, row_pitch=row_pitch,
                          m_chunk=m_chunk),
        out_shape=jax.ShapeDtypeStruct((batch, rows_out, f), jnp.bfloat16),
        grid=grid,
        in_specs=[pl.BlockSpec((bt, rows_in, c), lambda i: (i, 0, 0)),
                  _resident((9, c, f)),
                  _resident((1, f))],
        out_specs=pl.BlockSpec((bt, rows_out, f), lambda i: (i, 0, 0)),
        compiler_params=pltpu.CompilerParams(
            dimension_semantics=("parallel",),
            vmem_limit_bytes=_vmem_limit(need)),
        cost_estimate=cost,
    )(x, w_taps, b)


def pallas_critic_head(h_flat, action, kp, *, eps=1e-5):
    """Fused fc (K-tiled) + LayerNorm + both Q trunks.
    h_flat:(B, flat_pad) bf16, action:(B, A) bf16 -> (B, 2) f32 [q1|q2]."""
    batch, flat_pad = h_flat.shape
    a_dim = action.shape[1]
    feat = kp["fc_w"].shape[1]
    hidden = kp["q1"][0].shape[1]
    tk = 2048 if flat_pad > 2048 else flat_pad
    nk = flat_pad // tk
    tm = batch if batch <= 128 else 128       # >= 2 M-steps at realistic B
    grid = (pl.cdiv(batch, tm), nk)

    q_specs = []
    for _ in range(2):
        q_specs += [_resident((feat, hidden)), _resident((a_dim, hidden)),
                    _resident((1, hidden)), _resident((hidden, hidden)),
                    _resident((1, hidden)), _resident((1, hidden)),
                    _resident((1, 1))]

    flops = 2 * batch * (flat_pad * feat
                         + 2 * ((feat + a_dim) * hidden + hidden * hidden + hidden))
    cost = pl.CostEstimate(
        flops=flops, transcendentals=2 * batch,
        bytes_accessed=2 * batch * flat_pad + 2 * flat_pad * feat
        + 4 * (feat * hidden + hidden * hidden) + 4 * batch * 2)
    need = (2 * (tm * tk * 2 + tk * feat * 2 + tm * a_dim * 2 + tm * 2 * 4)
            + 2 * 2 * ((feat + a_dim) * hidden + hidden * hidden + 3 * hidden)
            + tm * feat * 4)

    return pl.pallas_call(
        functools.partial(_head_kernel, eps=eps),
        out_shape=jax.ShapeDtypeStruct((batch, 2), jnp.float32),
        grid=grid,
        in_specs=([pl.BlockSpec((tm, tk), lambda i, k: (i, k)),
                   pl.BlockSpec((tm, a_dim), lambda i, k: (i, 0)),
                   pl.BlockSpec((tk, feat), lambda i, k: (k, 0)),
                   _resident((1, feat)), _resident((1, feat)),
                   _resident((1, feat))]
                  + q_specs),
        out_specs=pl.BlockSpec((tm, 2), lambda i, k: (i, 0)),
        scratch_shapes=[pltpu.VMEM((tm, feat), jnp.float32)],
        compiler_params=pltpu.CompilerParams(
            dimension_semantics=("parallel", "arbitrary"),
            vmem_limit_bytes=_vmem_limit(need)),
        cost_estimate=cost,
    )(h_flat, action, kp["fc_w"], kp["fc_b"], kp["ln_g"], kp["ln_b"],
      *kp["q1"], *kp["q2"])


# ----------------------------------------------------------------------------
# Plain-JAX glue for conv0 only: NHWC im2col, column order (kh, kw, c).
# ----------------------------------------------------------------------------
def im2col_nhwc(x, k, stride):
    batch, h, w, c = x.shape
    oh = (h - k) // stride + 1
    ow = (w - k) // stride + 1
    cols = []
    for i in range(k):
        for j in range(k):
            cols.append(x[:, i:i + stride * oh:stride, j:j + stride * ow:stride, :])
    p = jnp.concatenate(cols, axis=-1)               # (B, OH, OW, k*k*C)
    return p.reshape(batch, oh * ow, k * k * c), oh, ow


def conv_out_hw(h, num_layers):
    oh = (h - 3) // 2 + 1                            # first conv: stride 2
    for _ in range(1, num_layers):                   # remaining convs: stride 1
        oh -= 2
    return oh


# ----------------------------------------------------------------------------
# Parameters: torch-layout init (mirrors weight_init) + kernel-layout prep
# (scale fold, permutes, splits, K-padding, bf16 casts) done ONCE.
# ----------------------------------------------------------------------------
def make_params(key, obs_shape, action_dim, hidden_dim, feature_dim,
                num_layers, num_filters):
    c, h, _ = obs_shape
    keys = jax.random.split(key, 12)
    orth = jax.nn.initializers.orthogonal()
    gain_relu = math.sqrt(2.0)

    def conv_init(k, out_c, in_c):
        w = jnp.zeros((out_c, in_c, 3, 3), jnp.float32)
        w = w.at[:, :, 1, 1].set(orth(k, (out_c, in_c), jnp.float32) * gain_relu)
        return w, jnp.zeros((out_c,), jnp.float32)

    def lin_init(k, out_d, in_d):                    # torch layout (out, in)
        return orth(k, (out_d, in_d), jnp.float32), jnp.zeros((out_d,), jnp.float32)

    params = {"conv": [conv_init(keys[0], num_filters, c)]}
    for i in range(1, num_layers):
        params["conv"].append(conv_init(keys[i], num_filters, num_filters))

    oh = conv_out_hw(h, num_layers)
    flat_dim = num_filters * oh * oh
    params["fc"] = lin_init(keys[4], feature_dim, flat_dim)
    params["ln"] = (jnp.ones((feature_dim,), jnp.float32),
                    jnp.zeros((feature_dim,), jnp.float32))

    def q_init(ks):
        w1, b1 = lin_init(ks[0], hidden_dim, feature_dim + action_dim)
        w2, b2 = lin_init(ks[1], hidden_dim, hidden_dim)
        w3, b3 = lin_init(ks[2], 1, hidden_dim)
        return (w1, b1, w2, b2, w3, b3)

    params["Q1"] = q_init(keys[5:8])
    params["Q2"] = q_init(keys[8:11])
    return params


def prepare_kernel_params(tp, obs_shape, num_layers, num_filters, feature_dim):
    _, h, _ = obs_shape
    kp = {}
    w0, b0 = tp["conv"][0]
    f0 = w0.shape[0]
    w0 = w0 / 255.0                                  # fold obs/255 into conv0
    # torch (F,C,KH,KW) -> im2col rows ordered (kh, kw, c), cols = F
    kp["conv0"] = (w0.transpose(2, 3, 1, 0).reshape(-1, f0).astype(jnp.bfloat16),
                   b0.reshape(1, f0).astype(jnp.float32))
    kp["convs"] = []
    for w, b in tp["conv"][1:]:
        f = w.shape[0]
        taps = w.transpose(2, 3, 1, 0).reshape(9, w.shape[1], f)  # (tap, C, F)
        kp["convs"].append((taps.astype(jnp.bfloat16),
                            b.reshape(1, f).astype(jnp.float32)))

    oh = conv_out_hw(h, num_layers)
    flat_dim = num_filters * oh * oh
    w_fc, b_fc = tp["fc"]
    # torch flattens NCHW as (f, oh, ow); our features are flattened (oh, ow, f)
    w_fc_nhwc = (w_fc.reshape(feature_dim, num_filters, oh, oh)
                 .transpose(2, 3, 1, 0).reshape(flat_dim, feature_dim))
    tk, flat_pad = _fc_k_tiling(flat_dim)
    del tk  # derived again from shapes at call time (keeps kp array-only for jit)
    w_fc_pad = jnp.zeros((flat_pad, feature_dim), jnp.float32)
    w_fc_pad = w_fc_pad.at[:flat_dim].set(w_fc_nhwc)
    kp["fc_w"] = w_fc_pad.astype(jnp.bfloat16)
    kp["fc_b"] = b_fc.reshape(1, -1).astype(jnp.float32)
    kp["ln_g"] = tp["ln"][0].reshape(1, -1).astype(jnp.float32)
    kp["ln_b"] = tp["ln"][1].reshape(1, -1).astype(jnp.float32)

    def prep_q(q):
        w1, b1, w2, b2, w3, b3 = q
        w1t = w1.T                                   # (feat + A, hidden)
        return (w1t[:feature_dim].astype(jnp.bfloat16),    # obs half
                w1t[feature_dim:].astype(jnp.bfloat16),    # action half
                b1.reshape(1, -1).astype(jnp.float32),
                w2.T.astype(jnp.bfloat16),
                b2.reshape(1, -1).astype(jnp.float32),
                w3.astype(jnp.float32),                    # (1, hidden) row
                b3.reshape(1, 1).astype(jnp.float32))

    kp["q1"] = prep_q(tp["Q1"])
    kp["q2"] = prep_q(tp["Q2"])
    return kp


# ----------------------------------------------------------------------------
# Critic forward (kernel path)
# ----------------------------------------------------------------------------
def critic_forward(kp, obs, action):
    batch = obs.shape[0]
    # single layout change at entry; NHWC thereafter
    x = jnp.transpose(obs, (0, 2, 3, 1)).astype(jnp.bfloat16)
    # conv0 (stride 2): patch build still in XLA.  TODO(synk): fold in-kernel.
    patches, oh0, ow0 = im2col_nhwc(x, 3, 2)
    w0, b0 = kp["conv0"]
    a = pallas_conv0(patches, w0, b0)                 # (B, oh0*ow0+_PAD, F)
    hs, ws = oh0, ow0                                 # stored rows / row pitch
    for w_taps, bias in kp["convs"]:                  # stride-1 convs, in-kernel
        a = pallas_conv3x3_s1(a, w_taps, bias, hs, ws)
        hs -= 2                                       # valid rows shrink by 2
    f = a.shape[-1]
    ow_valid = ws - 2 * len(kp["convs"])              # garbage cols grow by 2/layer
    h = a[:, :hs * ws, :].reshape(batch, hs, ws, f)[:, :, :ow_valid, :]
    h_flat = h.reshape(batch, hs * ow_valid * f)      # (oh, ow, f) order
    pad = kp["fc_w"].shape[0] - h_flat.shape[1]       # zero-pad to K-tile mult.
    if pad:
        h_flat = jnp.pad(h_flat, ((0, 0), (0, pad)))
    q = pallas_critic_head(h_flat, action.astype(jnp.bfloat16), kp)
    return q[:, 0:1], q[:, 1:2]


# ----------------------------------------------------------------------------
# Independent pure-JAX reference (NCHW lax.conv, torch-layout params), same
# dtype policy (bf16 matmul operands, f32 accumulation, f32 LayerNorm).
# ----------------------------------------------------------------------------
def _reference_forward(tp, obs, action, *, eps=1e-5):
    x = obs.astype(jnp.bfloat16)
    for li, (w, b) in enumerate(tp["conv"]):
        stride = 2 if li == 0 else 1
        wl = (w / 255.0) if li == 0 else w
        y = lax.conv_general_dilated(
            x, wl.astype(jnp.bfloat16), (stride, stride), "VALID",
            dimension_numbers=("NCHW", "OIHW", "NCHW"),
            preferred_element_type=jnp.float32)
        x = jnp.maximum(y + b[None, :, None, None], 0.0).astype(jnp.bfloat16)
    flat = x.reshape(x.shape[0], -1)                  # torch (f, oh, ow)
    w_fc, b_fc = tp["fc"]
    z = jnp.dot(flat, w_fc.T.astype(jnp.bfloat16),
                preferred_element_type=jnp.float32) + b_fc
    mean = z.mean(-1, keepdims=True)
    zc = z - mean
    var = (zc * zc).mean(-1, keepdims=True)
    feat = zc / jnp.sqrt(var + eps) * tp["ln"][0] + tp["ln"][1]
    oa = jnp.concatenate([feat.astype(jnp.bfloat16),
                          action.astype(jnp.bfloat16)], axis=1)

    def q(p):
        w1, b1, w2, b2, w3, b3 = p
        h1 = jnp.maximum(
            jnp.dot(oa, w1.T.astype(jnp.bfloat16),
                    preferred_element_type=jnp.float32) + b1, 0.0)
        h2 = jnp.maximum(
            jnp.dot(h1.astype(jnp.bfloat16), w2.T.astype(jnp.bfloat16),
                    preferred_element_type=jnp.float32) + b2, 0.0)
        return h2 @ w3.T + b3

    return q(tp["Q1"]), q(tp["Q2"])


if __name__ == "__main__":
    # Small shapes consistent with the module: pixel obs NCHW, vector action.
    B, C, H, W = 2, 4, 16, 16
    action_dim = 4
    hidden_dim = 32
    feature_dim = 32
    num_layers = 2
    num_filters = 8

    key = jax.random.PRNGKey(0)
    k_obs, k_act, k_par = jax.random.split(key, 3)
    obs = jax.random.uniform(k_obs, (B, C, H, W), jnp.float32,
                             minval=0.0, maxval=255.0)
    action = jax.random.uniform(k_act, (B, action_dim), jnp.float32,
                                minval=-1.0, maxval=1.0)

    torch_params = make_params(k_par, (C, H, W), action_dim, hidden_dim,
                               feature_dim, num_layers, num_filters)
    kparams = prepare_kernel_params(torch_params, (C, H, W), num_layers,
                                    num_filters, feature_dim)

    fwd = jax.jit(critic_forward)
    q1, q2 = fwd(kparams, obs, action)
    q1 = jax.block_until_ready(q1)
    q2 = jax.block_until_ready(q2)

    r1, r2 = _reference_forward(torch_params, obs, action)
    assert q1.shape == (B, 1) and q2.shape == (B, 1)
    assert jnp.allclose(q1, r1, atol=5e-3, rtol=5e-3), (q1, r1)
    assert jnp.allclose(q2, r2, atol=5e-3, rtol=5e-3), (q2, r2)

    print("KERNEL_OK")
</pallas_src>

<mosaic_0001>
module attributes {stable_mosaic.version = 11 : i64} {
  func.func @_conv0_kernel(%arg0: i32, %arg1: memref<1x49x36xbf16, #tpu.memory_space<vmem>>, %arg2: memref<36x8xbf16, #tpu.memory_space<vmem>>, %arg3: memref<1x8xf32, #tpu.memory_space<vmem>>, %arg4: memref<1x57x8xbf16, #tpu.memory_space<vmem>>) attributes {dimension_semantics = [#tpu.dimension_semantics<parallel>], iteration_bounds = array<i64: 2>, scalar_prefetch = 0 : i64, scratch_operands = 0 : i64, tpu.core_type = #tpu.core_type<tc>, window_params = [{transform_indices = @transform_0, window_bounds = array<i64: 1, 49, 36>}, {pipeline_mode = #tpu.pipeline_mode<synchronous>, transform_indices = @transform_1, window_bounds = array<i64: 36, 8>}, {pipeline_mode = #tpu.pipeline_mode<synchronous>, transform_indices = @transform_2, window_bounds = array<i64: 1, 8>}, {transform_indices = @transform_3, window_bounds = array<i64: 1, 57, 8>}]} {
    %c0 = arith.constant 0 : index
    %c0_0 = arith.constant 0 : index
    %c0_1 = arith.constant 0 : index
    %0 = vector.load %arg1[%c0, %c0_0, %c0_1] : memref<1x49x36xbf16, #tpu.memory_space<vmem>>, vector<1x49x36xbf16>
    %1 = vector.shape_cast %0 : vector<1x49x36xbf16> to vector<49x36xbf16>
    %c0_2 = arith.constant 0 : index
    %c0_3 = arith.constant 0 : index
    %2 = vector.load %arg2[%c0_2, %c0_3] : memref<36x8xbf16, #tpu.memory_space<vmem>>, vector<36x8xbf16>
    %cst = arith.constant dense<0.000000e+00> : vector<49x8xf32>
    %3 = tpu.matmul %1, %2, %cst {dimension_numbers = #tpu.dot_dimension_numbers<[1], [0], [0], [1], [0, 0, 1, 1], [], []>} : vector<49x36xbf16>, vector<36x8xbf16>, vector<49x8xf32> -> vector<49x8xf32>
    %c0_4 = arith.constant 0 : index
    %c0_5 = arith.constant 0 : index
    %4 = vector.load %arg3[%c0_4, %c0_5] : memref<1x8xf32, #tpu.memory_space<vmem>>, vector<1x8xf32>
    %5 = vector.broadcast %4 : vector<1x8xf32> to vector<49x8xf32>
    %6 = arith.addf %3, %5 : vector<49x8xf32>
    %cst_6 = arith.constant 0.000000e+00 : f32
    %7 = vector.broadcast %cst_6 : f32 to vector<49x8xf32>
    %8 = arith.maximumf %6, %7 : vector<49x8xf32>
    %9 = arith.truncf %8 : vector<49x8xf32> to vector<49x8xbf16>
    %c0_7 = arith.constant 0 : index
    %c0_8 = arith.constant 0 : index
    %c0_9 = arith.constant 0 : index
    %10 = vector.load %arg4[%c0_7, %c0_8, %c0_9] : memref<1x57x8xbf16, #tpu.memory_space<vmem>>, vector<1x49x8xbf16>
    %11 = vector.shape_cast %10 : vector<1x49x8xbf16> to vector<49x8xbf16>
    %12 = vector.shape_cast %9 : vector<49x8xbf16> to vector<1x49x8xbf16>
    tpu.vector_store %arg4[%c0_7, %c0_8, %c0_9], %12 {strides = array<i32>} : memref<1x57x8xbf16, #tpu.memory_space<vmem>>, vector<1x49x8xbf16>,
    %cst_10 = arith.constant 0.000000e+00 : bf16
    %13 = vector.broadcast %cst_10 : bf16 to vector<8x8xbf16>
    %c0_11 = arith.constant 0 : index
    %c49 = arith.constant 49 : index
    %c0_12 = arith.constant 0 : index
    %14 = vector.load %arg4[%c0_11, %c49, %c0_12] : memref<1x57x8xbf16, #tpu.memory_space<vmem>>, vector<1x8x8xbf16>
    %15 = vector.shape_cast %14 : vector<1x8x8xbf16> to vector<8x8xbf16>
    %16 = vector.shape_cast %13 : vector<8x8xbf16> to vector<1x8x8xbf16>
    tpu.vector_store %arg4[%c0_11, %c49, %c0_12], %16 {strides = array<i32>} : memref<1x57x8xbf16, #tpu.memory_space<vmem>>, vector<1x8x8xbf16>,
    return
  }
  func.func @transform_0(%arg0: i32) -> (i32, i32, i32) {
    %c0_i32 = arith.constant 0 : i32
    %c0_i32_0 = arith.constant 0 : i32
    %c0_i32_1 = arith.constant 0 : i32
    return %arg0, %c0_i32, %c0_i32_0 : i32, i32, i32
  }
  func.func @transform_1(%arg0: i32) -> (i32, i32) {
    %c0_i32 = arith.constant 0 : i32
    %c0_i32_0 = arith.constant 0 : i32
    %c0_i32_1 = arith.constant 0 : i32
    return %c0_i32, %c0_i32_0 : i32, i32
  }
  func.func @transform_2(%arg0: i32) -> (i32, i32) {
    %c0_i32 = arith.constant 0 : i32
    %c0_i32_0 = arith.constant 0 : i32
    %c0_i32_1 = arith.constant 0 : i32
    return %c0_i32, %c0_i32_0 : i32, i32
  }
  func.func @transform_3(%arg0: i32) -> (i32, i32, i32) {
    %c0_i32 = arith.constant 0 : i32
    %c0_i32_0 = arith.constant 0 : i32
    %c0_i32_1 = arith.constant 0 : i32
    return %arg0, %c0_i32, %c0_i32_0 : i32, i32, i32
  }
}

module attributes {stable_mosaic.version = 11 : i64} {
  func.func @_conv3x3_s1_kernel(%arg0: i32, %arg1: memref<1x57x8xbf16, #tpu.memory_space<vmem>>, %arg2: memref<9x8x8xbf16, #tpu.memory_space<vmem>>, %arg3: memref<1x8xf32, #tpu.memory_space<vmem>>, %arg4: memref<1x43x8xbf16, #tpu.memory_space<vmem>>) attributes {dimension_semantics = [#tpu.dimension_semantics<parallel>], iteration_bounds = array<i64: 2>, scalar_prefetch = 0 : i64, scratch_operands = 0 : i64, tpu.core_type = #tpu.core_type<tc>, window_params = [{transform_indices = @transform_0, window_bounds = array<i64: 1, 57, 8>}, {pipeline_mode = #tpu.pipeline_mode<synchronous>, transform_indices = @transform_1, window_bounds = array<i64: 9, 8, 8>}, {pipeline_mode = #tpu.pipeline_mode<synchronous>, transform_indices = @transform_2, window_bounds = array<i64: 1, 8>}, {transform_indices = @transform_3, window_bounds = array<i64: 1, 43, 8>}]} {
    %cst = arith.constant 0.000000e+00 : f32
    %0 = vector.broadcast %cst : f32 to vector<35x8xf32>
    %c0 = arith.constant 0 : index
    %c0_0 = arith.constant 0 : index
    %c0_1 = arith.constant 0 : index
    %1 = vector.load %arg1[%c0, %c0_0, %c0_1] : memref<1x57x8xbf16, #tpu.memory_space<vmem>>, vector<1x35x8xbf16>
    %2 = vector.shape_cast %1 : vector<1x35x8xbf16> to vector<35x8xbf16>
    %c0_2 = arith.constant 0 : index
    %c0_3 = arith.constant 0 : index
    %c0_4 = arith.constant 0 : index
    %3 = vector.load %arg2[%c0_2, %c0_3, %c0_4] : memref<9x8x8xbf16, #tpu.memory_space<vmem>>, vector<1x8x8xbf16>
    %4 = vector.shape_cast %3 : vector<1x8x8xbf16> to vector<8x8xbf16>
    %cst_5 = arith.constant dense<0.000000e+00> : vector<35x8xf32>
    %5 = tpu.matmul %2, %4, %cst_5 {dimension_numbers = #tpu.dot_dimension_numbers<[1], [0], [0], [1], [0, 0, 1, 1], [], []>} : vector<35x8xbf16>, vector<8x8xbf16>, vector<35x8xf32> -> vector<35x8xf32>
    %6 = arith.addf %0, %5 : vector<35x8xf32>
    %c0_6 = arith.constant 0 : index
    %c1 = arith.constant 1 : index
    %c0_7 = arith.constant 0 : index
    %7 = vector.load %arg1[%c0_6, %c1, %c0_7] : memref<1x57x8xbf16, #tpu.memory_space<vmem>>, vector<1x35x8xbf16>
    %8 = vector.shape_cast %7 : vector<1x35x8xbf16> to vector<35x8xbf16>
    %c1_8 = arith.constant 1 : index
    %c0_9 = arith.constant 0 : index
    %c0_10 = arith.constant 0 : index
    %9 = vector.load %arg2[%c1_8, %c0_9, %c0_10] : memref<9x8x8xbf16, #tpu.memory_space<vmem>>, vector<1x8x8xbf16>
    %10 = vector.shape_cast %9 : vector<1x8x8xbf16> to vector<8x8xbf16>
    %cst_11 = arith.constant dense<0.000000e+00> : vector<35x8xf32>
    %11 = tpu.matmul %8, %10, %cst_11 {dimension_numbers = #tpu.dot_dimension_numbers<[1], [0], [0], [1], [0, 0, 1, 1], [], []>} : vector<35x8xbf16>, vector<8x8xbf16>, vector<35x8xf32> -> vector<35x8xf32>
    %12 = arith.addf %6, %11 : vector<35x8xf32>
    %c0_12 = arith.constant 0 : index
    %c2 = arith.constant 2 : index
    %c0_13 = arith.constant 0 : index
    %13 = vector.load %arg1[%c0_12, %c2, %c0_13] : memref<1x57x8xbf16, #tpu.memory_space<vmem>>, vector<1x35x8xbf16>
    %14 = vector.shape_cast %13 : vector<1x35x8xbf16> to vector<35x8xbf16>
    %c2_14 = arith.constant 2 : index
    %c0_15 = arith.constant 0 : index
    %c0_16 = arith.constant 0 : index
    %15 = vector.load %arg2[%c2_14, %c0_15, %c0_16] : memref<9x8x8xbf16, #tpu.memory_space<vmem>>, vector<1x8x8xbf16>
    %16 = vector.shape_cast %15 : vector<1x8x8xbf16> to vector<8x8xbf16>
    %cst_17 = arith.constant dense<0.000000e+00> : vector<35x8xf32>
    %17 = tpu.matmul %14, %16, %cst_17 {dimension_numbers = #tpu.dot_dimension_numbers<[1], [0], [0], [1], [0, 0, 1, 1], [], []>} : vector<35x8xbf16>, vector<8x8xbf16>, vector<35x8xf32> -> vector<35x8xf32>
    %18 = arith.addf %12, %17 : vector<35x8xf32>
    %c0_18 = arith.constant 0 : index
    %c7 = arith.constant 7 : index
    %c0_19 = arith.constant 0 : index
    %19 = vector.load %arg1[%c0_18, %c7, %c0_19] : memref<1x57x8xbf16, #tpu.memory_space<vmem>>, vector<1x35x8xbf16>
    %20 = vector.shape_cast %19 : vector<1x35x8xbf16> to vector<35x8xbf16>
    %c3 = arith.constant 3 : index
    %c0_20 = arith.constant 0 : index
    %c0_21 = arith.constant 0 : index
    %21 = vector.load %arg2[%c3, %c0_20, %c0_21] : memref<9x8x8xbf16, #tpu.memory_space<vmem>>, vector<1x8x8xbf16>
    %22 = vector.shape_cast %21 : vector<1x8x8xbf16> to vector<8x8xbf16>
    %cst_22 = arith.constant dense<0.000000e+00> : vector<35x8xf32>
    %23 = tpu.matmul %20, %22, %cst_22 {dimension_numbers = #tpu.dot_dimension_numbers<[1], [0], [0], [1], [0, 0, 1, 1], [], []>} : vector<35x8xbf16>, vector<8x8xbf16>, vector<35x8xf32> -> vector<35x8xf32>
    %24 = arith.addf %18, %23 : vector<35x8xf32>
    %c0_23 = arith.constant 0 : index
    %c8 = arith.constant 8 : index
    %c0_24 = arith.constant 0 : index
    %25 = vector.load %arg1[%c0_23, %c8, %c0_24] : memref<1x57x8xbf16, #tpu.memory_space<vmem>>, vector<1x35x8xbf16>
    %26 = vector.shape_cast %25 : vector<1x35x8xbf16> to vector<35x8xbf16>
    %c4 = arith.constant 4 : index
    %c0_25 = arith.constant 0 : index
    %c0_26 = arith.constant 0 : index
    %27 = vector.load %arg2[%c4, %c0_25, %c0_26] : memref<9x8x8xbf16, #tpu.memory_space<vmem>>, vector<1x8x8xbf16>
    %28 = vector.shape_cast %27 : vector<1x8x8xbf16> to vector<8x8xbf16>
    %cst_27 = arith.constant dense<0.000000e+00> : vector<35x8xf32>
    %29 = tpu.matmul %26, %28, %cst_27 {dimension_numbers = #tpu.dot_dimension_numbers<[1], [0], [0], [1], [0, 0, 1, 1], [], []>} : vector<35x8xbf16>, vector<8x8xbf16>, vector<35x8xf32> -> vector<35x8xf32>
    %30 = arith.addf %24, %29 : vector<35x8xf32>
    %c0_28 = arith.constant 0 : index
    %c9 = arith.constant 9 : index
    %c0_29 = arith.constant 0 : index
    %31 = vector.load %arg1[%c0_28, %c9, %c0_29] : memref<1x57x8xbf16, #tpu.memory_space<vmem>>, vector<1x35x8xbf16>
    %32 = vector.shape_cast %31 : vector<1x35x8xbf16> to vector<35x8xbf16>
    %c5 = arith.constant 5 : index
    %c0_30 = arith.constant 0 : index
    %c0_31 = arith.constant 0 : index
    %33 = vector.load %arg2[%c5, %c0_30, %c0_31] : memref<9x8x8xbf16, #tpu.memory_space<vmem>>, vector<1x8x8xbf16>
    %34 = vector.shape_cast %33 : vector<1x8x8xbf16> to vector<8x8xbf16>
    %cst_32 = arith.constant dense<0.000000e+00> : vector<35x8xf32>
    %35 = tpu.matmul %32, %34, %cst_32 {dimension_numbers = #tpu.dot_dimension_numbers<[1], [0], [0], [1], [0, 0, 1, 1], [], []>} : vector<35x8xbf16>, vector<8x8xbf16>, vector<35x8xf32> -> vector<35x8xf32>
    %36 = arith.addf %30, %35 : vector<35x8xf32>
    %c0_33 = arith.constant 0 : index
    %c14 = arith.constant 14 : index
    %c0_34 = arith.constant 0 : index
    %37 = vector.load %arg1[%c0_33, %c14, %c0_34] : memref<1x57x8xbf16, #tpu.memory_space<vmem>>, vector<1x35x8xbf16>
    %38 = vector.shape_cast %37 : vector<1x35x8xbf16> to vector<35x8xbf16>
    %c6 = arith.constant 6 : index
    %c0_35 = arith.constant 0 : index
    %c0_36 = arith.constant 0 : index
    %39 = vector.load %arg2[%c6, %c0_35, %c0_36] : memref<9x8x8xbf16, #tpu.memory_space<vmem>>, vector<1x8x8xbf16>
    %40 = vector.shape_cast %39 : vector<1x8x8xbf16> to vector<8x8xbf16>
    %cst_37 = arith.constant dense<0.000000e+00> : vector<35x8xf32>
    %41 = tpu.matmul %38, %40, %cst_37 {dimension_numbers = #tpu.dot_dimension_numbers<[1], [0], [0], [1], [0, 0, 1, 1], [], []>} : vector<35x8xbf16>, vector<8x8xbf16>, vector<35x8xf32> -> vector<35x8xf32>
    %42 = arith.addf %36, %41 : vector<35x8xf32>
    %c0_38 = arith.constant 0 : index
    %c15 = arith.constant 15 : index
    %c0_39 = arith.constant 0 : index
    %43 = vector.load %arg1[%c0_38, %c15, %c0_39] : memref<1x57x8xbf16, #tpu.memory_space<vmem>>, vector<1x35x8xbf16>
    %44 = vector.shape_cast %43 : vector<1x35x8xbf16> to vector<35x8xbf16>
    %c7_40 = arith.constant 7 : index
    %c0_41 = arith.constant 0 : index
    %c0_42 = arith.constant 0 : index
    %45 = vector.load %arg2[%c7_40, %c0_41, %c0_42] : memref<9x8x8xbf16, #tpu.memory_space<vmem>>, vector<1x8x8xbf16>
    %46 = vector.shape_cast %45 : vector<1x8x8xbf16> to vector<8x8xbf16>
    %cst_43 = arith.constant dense<0.000000e+00> : vector<35x8xf32>
    %47 = tpu.matmul %44, %46, %cst_43 {dimension_numbers = #tpu.dot_dimension_numbers<[1], [0], [0], [1], [0, 0, 1, 1], [], []>} : vector<35x8xbf16>, vector<8x8xbf16>, vector<35x8xf32> -> vector<35x8xf32>
    %48 = arith.addf %42, %47 : vector<35x8xf32>
    %c0_44 = arith.constant 0 : index
    %c16 = arith.constant 16 : index
    %c0_45 = arith.constant 0 : index
    %49 = vector.load %arg1[%c0_44, %c16, %c0_45] : memref<1x57x8xbf16, #tpu.memory_space<vmem>>, vector<1x35x8xbf16>
    %50 = vector.shape_cast %49 : vector<1x35x8xbf16> to vector<35x8xbf16>
    %c8_46 = arith.constant 8 : index
    %c0_47 = arith.constant 0 : index
    %c0_48 = arith.constant 0 : index
    %51 = vector.load %arg2[%c8_46, %c0_47, %c0_48] : memref<9x8x8xbf16, #tpu.memory_space<vmem>>, vector<1x8x8xbf16>
    %52 = vector.shape_cast %51 : vector<1x8x8xbf16> to vector<8x8xbf16>
    %cst_49 = arith.constant dense<0.000000e+00> : vector<35x8xf32>
    %53 = tpu.matmul %50, %52, %cst_49 {dimension_numbers = #tpu.dot_dimension_numbers<[1], [0], [0], [1], [0, 0, 1, 1], [], []>} : vector<35x8xbf16>, vector<8x8xbf16>, vector<35x8xf32> -> vector<35x8xf32>
    %54 = arith.addf %48, %53 : vector<35x8xf32>
    %c0_50 = arith.constant 0 : index
    %c0_51 = arith.constant 0 : index
    %55 = vector.load %arg3[%c0_50, %c0_51] : memref<1x8xf32, #tpu.memory_space<vmem>>, vector<1x8xf32>
    %56 = vector.broadcast %55 : vector<1x8xf32> to vector<35x8xf32>
    %57 = arith.addf %54, %56 : vector<35x8xf32>
    %cst_52 = arith.constant 0.000000e+00 : f32
    %58 = vector.broadcast %cst_52 : f32 to vector<35x8xf32>
    %59 = arith.maximumf %57, %58 : vector<35x8xf32>
    %60 = arith.truncf %59 : vector<35x8xf32> to vector<35x8xbf16>
    %c0_53 = arith.constant 0 : index
    %c0_54 = arith.constant 0 : index
    %c0_55 = arith.constant 0 : index
    %61 = vector.load %arg4[%c0_53, %c0_54, %c0_55] : memref<1x43x8xbf16, #tpu.memory_space<vmem>>, vector<1x35x8xbf16>
    %62 = vector.shape_cast %61 : vector<1x35x8xbf16> to vector<35x8xbf16>
    %63 = vector.shape_cast %60 : vector<35x8xbf16> to vector<1x35x8xbf16>
    tpu.vector_store %arg4[%c0_53, %c0_54, %c0_55], %63 {strides = array<i32>} : memref<1x43x8xbf16, #tpu.memory_space<vmem>>, vector<1x35x8xbf16>,
    %cst_56 = arith.constant 0.000000e+00 : bf16
    %64 = vector.broadcast %cst_56 : bf16 to vector<8x8xbf16>
    %c0_57 = arith.constant 0 : index
    %c35 = arith.constant 35 : index
    %c0_58 = arith.constant 0 : index
    %65 = vector.load %arg4[%c0_57, %c35, %c0_58] : memref<1x43x8xbf16, #tpu.memory_space<vmem>>, vector<1x8x8xbf16>
    %66 = vector.shape_cast %65 : vector<1x8x8xbf16> to vector<8x8xbf16>
    %67 = vector.shape_cast %64 : vector<8x8xbf16> to vector<1x8x8xbf16>
    tpu.vector_store %arg4[%c0_57, %c35, %c0_58], %67 {strides = array<i32>} : memref<1x43x8xbf16, #tpu.memory_space<vmem>>, vector<1x8x8xbf16>,
    return
  }
  func.func @transform_0(%arg0: i32) -> (i32, i32, i32) {
    %c0_i32 = arith.constant 0 : i32
    %c0_i32_0 = arith.constant 0 : i32
    %c0_i32_1 = arith.constant 0 : i32
    return %arg0, %c0_i32, %c0_i32_0 : i32, i32, i32
  }
  func.func @transform_1(%arg0: i32) -> (i32, i32, i32) {
    %c0_i32 = arith.constant 0 : i32
    %c0_i32_0 = arith.constant 0 : i32
    %c0_i32_1 = arith.constant 0 : i32
    %c0_i32_2 = arith.constant 0 : i32
    return %c0_i32, %c0_i32_0, %c0_i32_1 : i32, i32, i32
  }
  func.func @transform_2(%arg0: i32) -> (i32, i32) {
    %c0_i32 = arith.constant 0 : i32
    %c0_i32_0 = arith.constant 0 : i32
    %c0_i32_1 = arith.constant 0 : i32
    return %c0_i32, %c0_i32_0 : i32, i32
  }
  func.func @transform_3(%arg0: i32) -> (i32, i32, i32) {
    %c0_i32 = arith.constant 0 : i32
    %c0_i32_0 = arith.constant 0 : i32
    %c0_i32_1 = arith.constant 0 : i32
    return %arg0, %c0_i32, %c0_i32_0 : i32, i32, i32
  }
}

module attributes {stable_mosaic.version = 11 : i64} {
  func.func @_head_kernel(%arg0: i32, %arg1: i32, %arg2: memref<2x256xbf16, #tpu.memory_space<vmem>>, %arg3: memref<2x4xbf16, #tpu.memory_space<vmem>>, %arg4: memref<256x32xbf16, #tpu.memory_space<vmem>>, %arg5: memref<1x32xf32, #tpu.memory_space<vmem>>, %arg6: memref<1x32xf32, #tpu.memory_space<vmem>>, %arg7: memref<1x32xf32, #tpu.memory_space<vmem>>, %arg8: memref<32x32xbf16, #tpu.memory_space<vmem>>, %arg9: memref<4x32xbf16, #tpu.memory_space<vmem>>, %arg10: memref<1x32xf32, #tpu.memory_space<vmem>>, %arg11: memref<32x32xbf16, #tpu.memory_space<vmem>>, %arg12: memref<1x32xf32, #tpu.memory_space<vmem>>, %arg13: memref<1x32xf32, #tpu.memory_space<vmem>>, %arg14: memref<1x1xf32, #tpu.memory_space<vmem>>, %arg15: memref<32x32xbf16, #tpu.memory_space<vmem>>, %arg16: memref<4x32xbf16, #tpu.memory_space<vmem>>, %arg17: memref<1x32xf32, #tpu.memory_space<vmem>>, %arg18: memref<32x32xbf16, #tpu.memory_space<vmem>>, %arg19: memref<1x32xf32, #tpu.memory_space<vmem>>, %arg20: memref<1x32xf32, #tpu.memory_space<vmem>>, %arg21: memref<1x1xf32, #tpu.memory_space<vmem>>, %arg22: memref<2x2xf32, #tpu.memory_space<vmem>>, %arg23: memref<2x32xf32, #tpu.memory_space<vmem>>) attributes {dimension_semantics = [#tpu.dimension_semantics<parallel>, #tpu.dimension_semantics<arbitrary>], iteration_bounds = array<i64: 1, 1>, scalar_prefetch = 0 : i64, scratch_operands = 1 : i64, tpu.core_type = #tpu.core_type<tc>, window_params = [{transform_indices = @transform_0, window_bounds = array<i64: 2, 256>}, {transform_indices = @transform_1, window_bounds = array<i64: 2, 4>}, {transform_indices = @transform_2, window_bounds = array<i64: 256, 32>}, {pipeline_mode = #tpu.pipeline_mode<synchronous>, transform_indices = @transform_3, window_bounds = array<i64: 1, 32>}, {pipeline_mode = #tpu.pipeline_mode<synchronous>, transform_indices = @transform_4, window_bounds = array<i64: 1, 32>}, {pipeline_mode = #tpu.pipeline_mode<synchronous>, transform_indices = @transform_5, window_bounds = array<i64: 1, 32>}, {pipeline_mode = #tpu.pipeline_mode<synchronous>, transform_indices = @transform_6, window_bounds = array<i64: 32, 32>}, {pipeline_mode = #tpu.pipeline_mode<synchronous>, transform_indices = @transform_7, window_bounds = array<i64: 4, 32>}, {pipeline_mode = #tpu.pipeline_mode<synchronous>, transform_indices = @transform_8, window_bounds = array<i64: 1, 32>}, {pipeline_mode = #tpu.pipeline_mode<synchronous>, transform_indices = @transform_9, window_bounds = array<i64: 32, 32>}, {pipeline_mode = #tpu.pipeline_mode<synchronous>, transform_indices = @transform_10, window_bounds = array<i64: 1, 32>}, {pipeline_mode = #tpu.pipeline_mode<synchronous>, transform_indices = @transform_11, window_bounds = array<i64: 1, 32>}, {pipeline_mode = #tpu.pipeline_mode<synchronous>, transform_indices = @transform_12, window_bounds = array<i64: 1, 1>}, {pipeline_mode = #tpu.pipeline_mode<synchronous>, transform_indices = @transform_13, window_bounds = array<i64: 32, 32>}, {pipeline_mode = #tpu.pipeline_mode<synchronous>, transform_indices = @transform_14, window_bounds = array<i64: 4, 32>}, {pipeline_mode = #tpu.pipeline_mode<synchronous>, transform_indices = @transform_15, window_bounds = array<i64: 1, 32>}, {pipeline_mode = #tpu.pipeline_mode<synchronous>, transform_indices = @transform_16, window_bounds = array<i64: 32, 32>}, {pipeline_mode = #tpu.pipeline_mode<synchronous>, transform_indices = @transform_17, window_bounds = array<i64: 1, 32>}, {pipeline_mode = #tpu.pipeline_mode<synchronous>, transform_indices = @transform_18, window_bounds = array<i64: 1, 32>}, {pipeline_mode = #tpu.pipeline_mode<synchronous>, transform_indices = @transform_19, window_bounds = array<i64: 1, 1>}, {transform_indices = @transform_20, window_bounds = array<i64: 2, 2>}]} {
    %c0_i32 = arith.constant 0 : i32
    %0 = arith.cmpi eq, %arg1, %c0_i32 : i32
    %1 = arith.extui %0 : i1 to i32
    %c0_i32_0 = arith.constant 0 : i32
    %2 = arith.cmpi ne, %1, %c0_i32_0 : i32
    scf.if %2 {
      %cst_10 = arith.constant 0.000000e+00 : f32
      %12 = vector.broadcast %cst_10 : f32 to vector<2x32xf32>
      %c0_11 = arith.constant 0 : index
      %c0_12 = arith.constant 0 : index
      %13 = vector.load %arg23[%c0_11, %c0_12] : memref<2x32xf32, #tpu.memory_space<vmem>>, vector<2x32xf32>
      tpu.vector_store %arg23[%c0_11, %c0_12], %12 {strides = array<i32>} : memref<2x32xf32, #tpu.memory_space<vmem>>, vector<2x32xf32>,
    } else {
    }
    %c0 = arith.constant 0 : index
    %c0_1 = arith.constant 0 : index
    %3 = vector.load %arg23[%c0, %c0_1] : memref<2x32xf32, #tpu.memory_space<vmem>>, vector<2x32xf32>
    %c0_2 = arith.constant 0 : index
    %c0_3 = arith.constant 0 : index
    %4 = vector.load %arg2[%c0_2, %c0_3] : memref<2x256xbf16, #tpu.memory_space<vmem>>, vector<2x256xbf16>
    %c0_4 = arith.constant 0 : index
    %c0_5 = arith.constant 0 : index
    %5 = vector.load %arg4[%c0_4, %c0_5] : memref<256x32xbf16, #tpu.memory_space<vmem>>, vector<256x32xbf16>
    %cst = arith.constant dense<0.000000e+00> : vector<2x32xf32>
    %6 = tpu.matmul %4, %5, %cst {dimension_numbers = #tpu.dot_dimension_numbers<[1], [0], [0], [1], [0, 0, 1, 1], [], []>} : vector<2x256xbf16>, vector<256x32xbf16>, vector<2x32xf32> -> vector<2x32xf32>
    %7 = arith.addf %3, %6 : vector<2x32xf32>
    %c0_6 = arith.constant 0 : index
    %c0_7 = arith.constant 0 : index
    %8 = vector.load %arg23[%c0_6, %c0_7] : memref<2x32xf32, #tpu.memory_space<vmem>>, vector<2x32xf32>
    tpu.vector_store %arg23[%c0_6, %c0_7], %7 {strides = array<i32>} : memref<2x32xf32, #tpu.memory_space<vmem>>, vector<2x32xf32>,
    %c0_i32_8 = arith.constant 0 : i32
    %9 = arith.cmpi eq, %arg1, %c0_i32_8 : i32
    %10 = arith.extui %9 : i1 to i32
    %c0_i32_9 = arith.constant 0 : i32
    %11 = arith.cmpi ne, %10, %c0_i32_9 : i32
    scf.if %11 {
      %c0_10 = arith.constant 0 : index
      %c0_11 = arith.constant 0 : index
      %12 = vector.load %arg23[%c0_10, %c0_11] : memref<2x32xf32, #tpu.memory_space<vmem>>, vector<2x32xf32>
      %c0_12 = arith.constant 0 : index
      %c0_13 = arith.constant 0 : index
      %13 = vector.load %arg5[%c0_12, %c0_13] : memref<1x32xf32, #tpu.memory_space<vmem>>, vector<1x32xf32>
      %14 = vector.broadcast %13 : vector<1x32xf32> to vector<2x32xf32>
      %15 = arith.addf %12, %14 : vector<2x32xf32>
      %cst_14 = arith.constant dense<0.000000e+00> : vector<2xf32>
      %16 = vector.multi_reduction <add>, %15, %cst_14 [1] : vector<2x32xf32> to vector<2xf32>
      %17 = vector.shape_cast %16 : vector<2xf32> to vector<2x1xf32>
      %cst_15 = arith.constant 3.200000e+01 : f32
      %18 = vector.broadcast %cst_15 : f32 to vector<2x1xf32>
      %19 = arith.divf %17, %18 : vector<2x1xf32>
      %20 = vector.broadcast %19 : vector<2x1xf32> to vector<2x32xf32>
      %21 = arith.subf %15, %20 : vector<2x32xf32>
      %22 = arith.mulf %21, %21 : vector<2x32xf32>
      %cst_16 = arith.constant dense<0.000000e+00> : vector<2xf32>
      %23 = vector.multi_reduction <add>, %22, %cst_16 [1] : vector<2x32xf32> to vector<2xf32>
      %24 = vector.shape_cast %23 : vector<2xf32> to vector<2x1xf32>
      %cst_17 = arith.constant 3.200000e+01 : f32
      %25 = vector.broadcast %cst_17 : f32 to vector<2x1xf32>
      %26 = arith.divf %24, %25 : vector<2x1xf32>
      %cst_18 = arith.constant 9.99999974E-6 : f32
      %27 = vector.broadcast %cst_18 : f32 to vector<2x1xf32>
      %28 = arith.addf %26, %27 : vector<2x1xf32>
      %29 = math.rsqrt %28 : vector<2x1xf32>
      %30 = vector.broadcast %29 : vector<2x1xf32> to vector<2x32xf32>
      %31 = arith.mulf %21, %30 : vector<2x32xf32>
      %c0_19 = arith.constant 0 : index
      %c0_20 = arith.constant 0 : index
      %32 = vector.load %arg6[%c0_19, %c0_20] : memref<1x32xf32, #tpu.memory_space<vmem>>, vector<1x32xf32>
      %33 = vector.broadcast %32 : vector<1x32xf32> to vector<2x32xf32>
      %34 = arith.mulf %31, %33 : vector<2x32xf32>
      %c0_21 = arith.constant 0 : index
      %c0_22 = arith.constant 0 : index
      %35 = vector.load %arg7[%c0_21, %c0_22] : memref<1x32xf32, #tpu.memory_space<vmem>>, vector<1x32xf32>
      %36 = vector.broadcast %35 : vector<1x32xf32> to vector<2x32xf32>
      %37 = arith.addf %34, %36 : vector<2x32xf32>
      %38 = arith.truncf %37 : vector<2x32xf32> to vector<2x32xbf16>
      %c0_23 = arith.constant 0 : index
      %c0_24 = arith.constant 0 : index
      %39 = vector.load %arg3[%c0_23, %c0_24] : memref<2x4xbf16, #tpu.memory_space<vmem>>, vector<2x4xbf16>
      %c0_25 = arith.constant 0 : index
      %c0_26 = arith.constant 0 : index
      %40 = vector.load %arg8[%c0_25, %c0_26] : memref<32x32xbf16, #tpu.memory_space<vmem>>, vector<32x32xbf16>
      %cst_27 = arith.constant dense<0.000000e+00> : vector<2x32xf32>
      %41 = tpu.matmul %38, %40, %cst_27 {dimension_numbers = #tpu.dot_dimension_numbers<[1], [0], [0], [1], [0, 0, 1, 1], [], []>} : vector<2x32xbf16>, vector<32x32xbf16>, vector<2x32xf32> -> vector<2x32xf32>
      %c0_28 = arith.constant 0 : index
      %c0_29 = arith.constant 0 : index
      %42 = vector.load %arg9[%c0_28, %c0_29] : memref<4x32xbf16, #tpu.memory_space<vmem>>, vector<4x32xbf16>
      %cst_30 = arith.constant dense<0.000000e+00> : vector<2x32xf32>
      %43 = tpu.matmul %39, %42, %cst_30 {dimension_numbers = #tpu.dot_dimension_numbers<[1], [0], [0], [1], [0, 0, 1, 1], [], []>} : vector<2x4xbf16>, vector<4x32xbf16>, vector<2x32xf32> -> vector<2x32xf32>
      %44 = arith.addf %41, %43 : vector<2x32xf32>
      %c0_31 = arith.constant 0 : index
      %c0_32 = arith.constant 0 : index
      %45 = vector.load %arg10[%c0_31, %c0_32] : memref<1x32xf32, #tpu.memory_space<vmem>>, vector<1x32xf32>
      %46 = vector.broadcast %45 : vector<1x32xf32> to vector<2x32xf32>
      %47 = arith.addf %44, %46 : vector<2x32xf32>
      %cst_33 = arith.constant 0.000000e+00 : f32
      %48 = vector.broadcast %cst_33 : f32 to vector<2x32xf32>
      %49 = arith.maximumf %47, %48 : vector<2x32xf32>
      %50 = arith.truncf %49 : vector<2x32xf32> to vector<2x32xbf16>
      %c0_34 = arith.constant 0 : index
      %c0_35 = arith.constant 0 : index
      %51 = vector.load %arg11[%c0_34, %c0_35] : memref<32x32xbf16, #tpu.memory_space<vmem>>, vector<32x32xbf16>
      %cst_36 = arith.constant dense<0.000000e+00> : vector<2x32xf32>
      %52 = tpu.matmul %50, %51, %cst_36 {dimension_numbers = #tpu.dot_dimension_numbers<[1], [0], [0], [1], [0, 0, 1, 1], [], []>} : vector<2x32xbf16>, vector<32x32xbf16>, vector<2x32xf32> -> vector<2x32xf32>
      %c0_37 = arith.constant 0 : index
      %c0_38 = arith.constant 0 : index
      %53 = vector.load %arg12[%c0_37, %c0_38] : memref<1x32xf32, #tpu.memory_space<vmem>>, vector<1x32xf32>
      %54 = vector.broadcast %53 : vector<1x32xf32> to vector<2x32xf32>
      %55 = arith.addf %52, %54 : vector<2x32xf32>
      %cst_39 = arith.constant 0.000000e+00 : f32
      %56 = vector.broadcast %cst_39 : f32 to vector<2x32xf32>
      %57 = arith.maximumf %55, %56 : vector<2x32xf32>
      %c0_40 = arith.constant 0 : index
      %c0_41 = arith.constant 0 : index
      %58 = vector.load %arg13[%c0_40, %c0_41] : memref<1x32xf32, #tpu.memory_space<vmem>>, vector<1x32xf32>
      %59 = vector.broadcast %58 : vector<1x32xf32> to vector<2x32xf32>
      %60 = arith.mulf %57, %59 : vector<2x32xf32>
      %cst_42 = arith.constant dense<0.000000e+00> : vector<2xf32>
      %61 = vector.multi_reduction <add>, %60, %cst_42 [1] : vector<2x32xf32> to vector<2xf32>
      %62 = vector.shape_cast %61 : vector<2xf32> to vector<2x1xf32>
      %c0_43 = arith.constant 0 : index
      %c0_44 = arith.constant 0 : index
      %63 = vector.load %arg14[%c0_43, %c0_44] : memref<1x1xf32, #tpu.memory_space<vmem>>, vector<1x1xf32>
      %64 = vector.broadcast %63 : vector<1x1xf32> to vector<2x1xf32>
      %65 = arith.addf %62, %64 : vector<2x1xf32>
      %c0_45 = arith.constant 0 : index
      %c0_46 = arith.constant 0 : index
      %66 = vector.load %arg15[%c0_45, %c0_46] : memref<32x32xbf16, #tpu.memory_space<vmem>>, vector<32x32xbf16>
      %cst_47 = arith.constant dense<0.000000e+00> : vector<2x32xf32>
      %67 = tpu.matmul %38, %66, %cst_47 {dimension_numbers = #tpu.dot_dimension_numbers<[1], [0], [0], [1], [0, 0, 1, 1], [], []>} : vector<2x32xbf16>, vector<32x32xbf16>, vector<2x32xf32> -> vector<2x32xf32>
      %c0_48 = arith.constant 0 : index
      %c0_49 = arith.constant 0 : index
      %68 = vector.load %arg16[%c0_48, %c0_49] : memref<4x32xbf16, #tpu.memory_space<vmem>>, vector<4x32xbf16>
      %cst_50 = arith.constant dense<0.000000e+00> : vector<2x32xf32>
      %69 = tpu.matmul %39, %68, %cst_50 {dimension_numbers = #tpu.dot_dimension_numbers<[1], [0], [0], [1], [0, 0, 1, 1], [], []>} : vector<2x4xbf16>, vector<4x32xbf16>, vector<2x32xf32> -> vector<2x32xf32>
      %70 = arith.addf %67, %69 : vector<2x32xf32>
      %c0_51 = arith.constant 0 : index
      %c0_52 = arith.constant 0 : index
      %71 = vector.load %arg17[%c0_51, %c0_52] : memref<1x32xf32, #tpu.memory_space<vmem>>, vector<1x32xf32>
      %72 = vector.broadcast %71 : vector<1x32xf32> to vector<2x32xf32>
      %73 = arith.addf %70, %72 : vector<2x32xf32>
      %cst_53 = arith.constant 0.000000e+00 : f32
      %74 = vector.broadcast %cst_53 : f32 to vector<2x32xf32>
      %75 = arith.maximumf %73, %74 : vector<2x32xf32>
      %76 = arith.truncf %75 : vector<2x32xf32> to vector<2x32xbf16>
      %c0_54 = arith.constant 0 : index
      %c0_55 = arith.constant 0 : index
      %77 = vector.load %arg18[%c0_54, %c0_55] : memref<32x32xbf16, #tpu.memory_space<vmem>>, vector<32x32xbf16>
      %cst_56 = arith.constant dense<0.000000e+00> : vector<2x32xf32>
      %78 = tpu.matmul %76, %77, %cst_56 {dimension_numbers = #tpu.dot_dimension_numbers<[1], [0], [0], [1], [0, 0, 1, 1], [], []>} : vector<2x32xbf16>, vector<32x32xbf16>, vector<2x32xf32> -> vector<2x32xf32>
      %c0_57 = arith.constant 0 : index
      %c0_58 = arith.constant 0 : index
      %79 = vector.load %arg19[%c0_57, %c0_58] : memref<1x32xf32, #tpu.memory_space<vmem>>, vector<1x32xf32>
      %80 = vector.broadcast %79 : vector<1x32xf32> to vector<2x32xf32>
      %81 = arith.addf %78, %80 : vector<2x32xf32>
      %cst_59 = arith.constant 0.000000e+00 : f32
      %82 = vector.broadcast %cst_59 : f32 to vector<2x32xf32>
      %83 = arith.maximumf %81, %82 : vector<2x32xf32>
      %c0_60 = arith.constant 0 : index
      %c0_61 = arith.constant 0 : index
      %84 = vector.load %arg20[%c0_60, %c0_61] : memref<1x32xf32, #tpu.memory_space<vmem>>, vector<1x32xf32>
      %85 = vector.broadcast %84 : vector<1x32xf32> to vector<2x32xf32>
      %86 = arith.mulf %83, %85 : vector<2x32xf32>
      %cst_62 = arith.constant dense<0.000000e+00> : vector<2xf32>
      %87 = vector.multi_reduction <add>, %86, %cst_62 [1] : vector<2x32xf32> to vector<2xf32>
      %88 = vector.shape_cast %87 : vector<2xf32> to vector<2x1xf32>
      %c0_63 = arith.constant 0 : index
      %c0_64 = arith.constant 0 : index
      %89 = vector.load %arg21[%c0_63, %c0_64] : memref<1x1xf32, #tpu.memory_space<vmem>>, vector<1x1xf32>
      %90 = vector.broadcast %89 : vector<1x1xf32> to vector<2x1xf32>
      %91 = arith.addf %88, %90 : vector<2x1xf32>
      %c0_65 = arith.constant 0 : index
      %c0_66 = arith.constant 0 : index
      %92 = vector.load %arg22[%c0_65, %c0_66] : memref<2x2xf32, #tpu.memory_space<vmem>>, vector<2x1xf32>
      tpu.vector_store %arg22[%c0_65, %c0_66], %65 {strides = array<i32>} : memref<2x2xf32, #tpu.memory_space<vmem>>, vector<2x1xf32>,
      %c0_67 = arith.constant 0 : index
      %c1 = arith.constant 1 : index
      %93 = vector.load %arg22[%c0_67, %c1] : memref<2x2xf32, #tpu.memory_space<vmem>>, vector<2x1xf32>
      tpu.vector_store %arg22[%c0_67, %c1], %91 {strides = array<i32>} : memref<2x2xf32, #tpu.memory_space<vmem>>, vector<2x1xf32>,
    } else {
    }
    return
  }
  func.func @transform_0(%arg0: i32, %arg1: i32) -> (i32, i32) {
    %c0_i32 = arith.constant 0 : i32
    return %arg0, %arg1 : i32, i32
  }
  func.func @transform_1(%arg0: i32, %arg1: i32) -> (i32, i32) {
    %c0_i32 = arith.constant 0 : i32
    %c0_i32_0 = arith.constant 0 : i32
    return %arg0, %c0_i32 : i32, i32
  }
  func.func @transform_2(%arg0: i32, %arg1: i32) -> (i32, i32) {
    %c0_i32 = arith.constant 0 : i32
    %c0_i32_0 = arith.constant 0 : i32
    return %arg1, %c0_i32 : i32, i32
  }
  func.func @transform_3(%arg0: i32, %arg1: i32) -> (i32, i32) {
    %c0_i32 = arith.constant 0 : i32
    %c0_i32_0 = arith.constant 0 : i32
    %c0_i32_1 = arith.constant 0 : i32
    return %c0_i32, %c0_i32_0 : i32, i32
  }
  func.func @transform_4(%arg0: i32, %arg1: i32) -> (i32, i32) {
    %c0_i32 = arith.constant 0 : i32
    %c0_i32_0 = arith.constant 0 : i32
    %c0_i32_1 = arith.constant 0 : i32
    return %c0_i32, %c0_i32_0 : i32, i32
  }
  func.func @transform_5(%arg0: i32, %arg1: i32) -> (i32, i32) {
    %c0_i32 = arith.constant 0 : i32
    %c0_i32_0 = arith.constant 0 : i32
    %c0_i32_1 = arith.constant 0 : i32
    return %c0_i32, %c0_i32_0 : i32, i32
  }
  func.func @transform_6(%arg0: i32, %arg1: i32) -> (i32, i32) {
    %c0_i32 = arith.constant 0 : i32
    %c0_i32_0 = arith.constant 0 : i32
    %c0_i32_1 = arith.constant 0 : i32
    return %c0_i32, %c0_i32_0 : i32, i32
  }
  func.func @transform_7(%arg0: i32, %arg1: i32) -> (i32, i32) {
    %c0_i32 = arith.constant 0 : i32
    %c0_i32_0 = arith.constant 0 : i32
    %c0_i32_1 = arith.constant 0 : i32
    return %c0_i32, %c0_i32_0 : i32, i32
  }
  func.func @transform_8(%arg0: i32, %arg1: i32) -> (i32, i32) {
    %c0_i32 = arith.constant 0 : i32
    %c0_i32_0 = arith.constant 0 : i32
    %c0_i32_1 = arith.constant 0 : i32
    return %c0_i32, %c0_i32_0 : i32, i32
  }
  func.func @transform_9(%arg0: i32, %arg1: i32) -> (i32, i32) {
    %c0_i32 = arith.constant 0 : i32
    %c0_i32_0 = arith.constant 0 : i32
    %c0_i32_1 = arith.constant 0 : i32
    return %c0_i32, %c0_i32_0 : i32, i32
  }
  func.func @transform_10(%arg0: i32, %arg1: i32) -> (i32, i32) {
    %c0_i32 = arith.constant 0 : i32
    %c0_i32_0 = arith.constant 0 : i32
    %c0_i32_1 = arith.constant 0 : i32
    return %c0_i32, %c0_i32_0 : i32, i32
  }
  func.func @transform_11(%arg0: i32, %arg1: i32) -> (i32, i32) {
    %c0_i32 = arith.constant 0 : i32
    %c0_i32_0 = arith.constant 0 : i32
    %c0_i32_1 = arith.constant 0 : i32
    return %c0_i32, %c0_i32_0 : i32, i32
  }
  func.func @transform_12(%arg0: i32, %arg1: i32) -> (i32, i32) {
    %c0_i32 = arith.constant 0 : i32
    %c0_i32_0 = arith.constant 0 : i32
    %c0_i32_1 = arith.constant 0 : i32
    return %c0_i32, %c0_i32_0 : i32, i32
  }
  func.func @transform_13(%arg0: i32, %arg1: i32) -> (i32, i32) {
    %c0_i32 = arith.constant 0 : i32
    %c0_i32_0 = arith.constant 0 : i32
    %c0_i32_1 = arith.constant 0 : i32
    return %c0_i32, %c0_i32_0 : i32, i32
  }
  func.func @transform_14(%arg0: i32, %arg1: i32) -> (i32, i32) {
    %c0_i32 = arith.constant 0 : i32
    %c0_i32_0 = arith.constant 0 : i32
    %c0_i32_1 = arith.constant 0 : i32
    return %c0_i32, %c0_i32_0 : i32, i32
  }
  func.func @transform_15(%arg0: i32, %arg1: i32) -> (i32, i32) {
    %c0_i32 = arith.constant 0 : i32
    %c0_i32_0 = arith.constant 0 : i32
    %c0_i32_1 = arith.constant 0 : i32
    return %c0_i32, %c0_i32_0 : i32, i32
  }
  func.func @transform_16(%arg0: i32, %arg1: i32) -> (i32, i32) {
    %c0_i32 = arith.constant 0 : i32
    %c0_i32_0 = arith.constant 0 : i32
    %c0_i32_1 = arith.constant 0 : i32
    return %c0_i32, %c0_i32_0 : i32, i32
  }
  func.func @transform_17(%arg0: i32, %arg1: i32) -> (i32, i32) {
    %c0_i32 = arith.constant 0 : i32
    %c0_i32_0 = arith.constant 0 : i32
    %c0_i32_1 = arith.constant 0 : i32
    return %c0_i32, %c0_i32_0 : i32, i32
  }
  func.func @transform_18(%arg0: i32, %arg1: i32) -> (i32, i32) {
    %c0_i32 = arith.constant 0 : i32
    %c0_i32_0 = arith.constant 0 : i32
    %c0_i32_1 = arith.constant 0 : i32
    return %c0_i32, %c0_i32_0 : i32, i32
  }
  func.func @transform_19(%arg0: i32, %arg1: i32) -> (i32, i32) {
    %c0_i32 = arith.constant 0 : i32
    %c0_i32_0 = arith.constant 0 : i32
    %c0_i32_1 = arith.constant 0 : i32
    return %c0_i32, %c0_i32_0 : i32, i32
  }
  func.func @transform_20(%arg0: i32, %arg1: i32) -> (i32, i32) {
    %c0_i32 = arith.constant 0 : i32
    %c0_i32_0 = arith.constant 0 : i32
    return %arg0, %c0_i32 : i32, i32
  }
}

</mosaic_0001>

<llo_original>
// kernel: critic_forward.3
$region0: #{critic_forward.3}
  #allocation0 [shape = 'u32[]', space=smem, size = 0x4, offset = 0x4, fixed_abs, tag = 'smem constant byte address 0x4 - core index']
  #allocation1 [shape = 'u32[72,128]{1,0:T(1,128)}', space=vmem, size = 0x9000, scoped, tag = 'internal scratch']
  %s0 = inlined_call_operand.vmem [shape: bf16[2,49,36], index: 0, kind: input, shape index: {}]
  %s1 = inlined_call_operand.vmem [shape: bf16[36,8], index: 1, kind: input, shape index: {}]
  %s2 = inlined_call_operand.vmem [shape: f32[1,8], index: 2, kind: input, shape index: {}]
  %s3 = inlined_call_operand.vmem [shape: bf16[2,57,8], index: 3, kind: output, shape index: {}]
  %s4 = sld [smem:[#allocation0]]
  $region45: #{critic_forward.3} parent=0
    _
  %s6 = ssub.s32 1, %s4
  %s7 = scalar_select 0, %s6, %s4
  loop: start=0, step=1, limit=4
  $region2: #{critic_forward.3} parent=0 // loop_pre_header
    _
  $region3: #{critic_forward.3} parent=0 // loop_header
    %s9 = sphi 0, %s13
    %p10 = scmp.ge.s32.totalorder %s9, 4
    %s19 = sphi 0, %s21
    %s22 = sphi 0, %s19
    %s23 = sphi 0, %s22
    %s39 = sphi 0, %s23
    %s43 = sphi 0, %s43
    %s45 = sphi 0, %s43
    %s46 = sphi 0, %s45
    %s60 = sphi 0, %s46
    %s64 = sphi 0, %s64
    %s66 = sphi 0, %s64
    %s67 = sphi 0, %s66
    %s81 = sphi 0, %s67
    %s87 = sphi 0, %s89
    %s90 = sphi 0, %s87
    %s91 = sphi 0, %s90
    %s107 = sphi 0, %s91
  $region4: #{critic_forward.3} parent=0 // loop_header_branch
    %12 = sbr.rel (%p10) target = $region8
  $region5: #{critic_forward.3} parent=0 // loop_body
    %s14 = ssub.s32 %s9, 1
    %s15 = ssub.s32 %s9, 2
    %s16 = sadd.s32 %s9, 1
    %s17 = ssub.s32 %s9, %s16
    %p18 = scmp.eq.s32.totalorder %s17, 0
    %s20 = sadd.s32 %s19, 1
    %s21 = scalar_select %p18, %s19, %s20
    %p24 = pneg %p18
    %p25 = scmp.eq.s32.totalorder %s9, 1
    %p26 = por %p24, %p25
    %p27 = scmp.ne.s32.totalorder %s19, %s22
    %p28 = scmp.eq.s32.totalorder %s9, 0
    %p29 = por %p27, %p28
    %p30 = scmp.ne.s32.totalorder %s19, %s22
    %p31 = scmp.eq.s32.totalorder %s14, 1
    %p32 = por %p30, %p31
    %p33 = scmp.ne.s32.totalorder %s22, %s23
    %p34 = scmp.eq.s32.totalorder %s14, 0
    %p35 = por %p33, %p34
    %p36 = scmp.ne.s32.totalorder %s22, %s23
    %p37 = scmp.eq.s32.totalorder %s15, 1
    %p38 = por %p36, %p37
    %p40 = scmp.ne.s32.totalorder %s23, %s39
    %p41 = scmp.eq.s32.totalorder %s15, 0
    %p42 = por %p40, %p41
    %s44 = sadd.s32 %s43, 1
    %p47 = scmp.eq.s32.totalorder %s9, 1
    %p48 = scmp.ne.s32.totalorder %s43, %s45
    %p49 = scmp.eq.s32.totalorder %s9, 0
    %p50 = por %p48, %p49
    %p51 = scmp.ne.s32.totalorder %s43, %s45
    %p52 = scmp.eq.s32.totalorder %s14, 1
    %p53 = por %p51, %p52
    %p54 = scmp.ne.s32.totalorder %s45, %s46
    %p55 = scmp.eq.s32.totalorder %s14, 0
    %p56 = por %p54, %p55
    %p57 = scmp.ne.s32.totalorder %s45, %s46
    %p58 = scmp.eq.s32.totalorder %s15, 1
    %p59 = por %p57, %p58
    %p61 = scmp.ne.s32.totalorder %s46, %s60
    %p62 = scmp.eq.s32.totalorder %s15, 0
    %p63 = por %p61, %p62
    %s65 = sadd.s32 %s64, 1
    %p68 = scmp.eq.s32.totalorder %s9, 1
    %p69 = scmp.ne.s32.totalorder %s64, %s66
    %p70 = scmp.eq.s32.totalorder %s9, 0
    %p71 = por %p69, %p70
    %p72 = scmp.ne.s32.totalorder %s64, %s66
    %p73 = scmp.eq.s32.totalorder %s14, 1
    %p74 = por %p72, %p73
    %p75 = scmp.ne.s32.totalorder %s66, %s67
    %p76 = scmp.eq.s32.totalorder %s14, 0
    %p77 = por %p75, %p76
    %p78 = scmp.ne.s32.totalorder %s66, %s67
    %p79 = scmp.eq.s32.totalorder %s15, 1
    %p80 = por %p78, %p79
    %p82 = scmp.ne.s32.totalorder %s67, %s81
    %p83 = scmp.eq.s32.totalorder %s15, 0
    %p84 = por %p82, %p83
    %s85 = ssub.s32 %s9, %s16
    %p86 = scmp.eq.s32.totalorder %s85, 0
    %s88 = sadd.s32 %s87, 1
    %s89 = scalar_select %p86, %s87, %s88
    %p92 = pneg %p86
    %p93 = scmp.eq.s32.totalorder %s9, 1
    %p94 = por %p92, %p93
    %p95 = scmp.ne.s32.totalorder %s87, %s90
    %p96 = scmp.eq.s32.totalorder %s9, 0
    %p97 = por %p95, %p96
    %p98 = scmp.ne.s32.totalorder %s87, %s90
    %p99 = scmp.eq.s32.totalorder %s14, 1
    %p100 = por %p98, %p99
    %p101 = scmp.ne.s32.totalorder %s90, %s91
    %p102 = scmp.eq.s32.totalorder %s14, 0
    %p103 = por %p101, %p102
    %p104 = scmp.ne.s32.totalorder %s90, %s91
    %p105 = scmp.eq.s32.totalorder %s15, 1
    %p106 = por %p104, %p105
    %p108 = scmp.ne.s32.totalorder %s91, %s107
    %p109 = scmp.eq.s32.totalorder %s15, 0
    %p110 = por %p108, %p109
    %p111 = scmp.le.s32.totalorder 1, %s9
    %p112 = scmp.lt.s32.totalorder %s9, 3
    %p113 = pnand %p111, %p112
    %p114 = pneg %p113
    // Predicated region
    $region9: #{critic_forward.3} parent=5 // pred_check
      _
    $region10: #{critic_forward.3} parent=5 // pred_check_branch
      %116 = sbr.rel (%p113) target = $region12
    $region11: #{critic_forward.3} parent=5 // pred_region
      %s117 = ssub.s32 %s9, 1
      // Predicated region
      $region13: #{critic_forward.3} parent=11 // pred_check
        %p118 = pneg %p56
      $region14: #{critic_forward.3} parent=11 // pred_check_branch
        %120 = sbr.rel (%p118) target = $region16
      $region15: #{critic_forward.3} parent=11 // pred_region
        _
      $region16: #{critic_forward.3} parent=11 // pred_fallthru
        _
      // Predicated region
      $region17: #{critic_forward.3} parent=11 // pred_check
        %p121 = pneg %p77
      $region18: #{critic_forward.3} parent=11 // pred_check_branch
        %123 = sbr.rel (%p121) target = $region20
      $region19: #{critic_forward.3} parent=11 // pred_region
        _
      $region20: #{critic_forward.3} parent=11 // pred_fallthru
        _
    $region12: #{critic_forward.3} parent=5 // pred_fallthru
      _
    %p124 = scmp.lt.s32.totalorder %s9, 2
    // Predicated region
    $region21: #{critic_forward.3} parent=5 // pred_check
      %p125 = pneg %p124
    $region22: #{critic_forward.3} parent=5 // pred_check_branch
      %127 = sbr.rel (%p125) target = $region24
    $region23: #{critic_forward.3} parent=5 // pred_region
      // Predicated region
      $region25: #{critic_forward.3} parent=23 // pred_check
        %p128 = pneg %p29
      $region26: #{critic_forward.3} parent=23 // pred_check_branch
        %130 = sbr.rel (%p128) target = $region28
      $region27: #{critic_forward.3} parent=23 // pred_region
        %p131 = scmp.lt.s32.totalorder %s9, 1
        %s132 = scalar_select %p131, %s9, 1
        %s133 = smul.addr %s132, 7
        %s134 = smul.addr %s133, 4
        %s135 = scalar_lea.vmem %s0, %s134
      $region28: #{critic_forward.3} parent=23 // pred_fallthru
        _
    $region24: #{critic_forward.3} parent=5 // pred_fallthru
      _
    %p136 = scmp.le.s32.totalorder 1, %s9
    %p137 = scmp.lt.s32.totalorder %s9, 3
    %p138 = pnand %p136, %p137
    %p139 = pneg %p138
    // Predicated region
    $region29: #{critic_forward.3} parent=5 // pred_check
      _
    $region30: #{critic_forward.3} parent=5 // pred_check_branch
      %141 = sbr.rel (%p138) target = $region32
    $region31: #{critic_forward.3} parent=5 // pred_region
      %s142 = ssub.s32 %s9, 1
      %p143 = scmp.lt.s32.totalorder %s14, 1
      %s144 = scalar_select %p143, %s14, 1
      %s145 = smul.addr %s144, 7
      %s146 = smul.addr %s145, 4
      %s147 = scalar_lea.vmem %s0, %s146
      %p148 = pneg %p35
      %p149 = pneg %p32
      %p150 = pneg %p56
      %p151 = pneg %p53
      %p152 = pneg %p77
      %p153 = pneg %p74
      %p154 = pneg %p103
      %p155 = pneg %p100
      %p156 = scmp.lt.s32.totalorder %s14, 1
      %s157 = scalar_select %p156, %s14, 1
      %s158 = smul.addr %s157, 8
      %s159 = smul.addr %s158, 4
      %s160 = scalar_lea.vmem %s3, %s159
      %p161 = scmp.lt.s32.totalorder %s14, 1
      %s162 = scalar_select %p161, %s14, 1
      %s163 = smul.addr %s162, 7
      %s164 = smul.addr %s163, 4
      %s165 = scalar_lea.vmem %s0, %s164
      %p166 = scmp.lt.s32.totalorder %s14, 1
      %s167 = scalar_select %p166, %s14, 1
      %s168 = smul.addr %s167, 8
      %s169 = smul.addr %s168, 4
      %s170 = scalar_lea.vmem %s3, %s169
      %v172 = vld [vmem:[%s165] sm:$0xf]
      %v173 = vld [vmem:[%s165 + $0x4] sm:$0xf]
      %v174 = vld [vmem:[%s165 + $0x8] sm:$0xf]
      %v175 = vld [vmem:[%s165 + $0xc] sm:$0xf]
      %v176 = vld [vmem:[%s165 + $0x10] sm:$0xf]
      %v177 = vld [vmem:[%s165 + $0x14] sm:$0xf]
      %v178 = vld [vmem:[%s165 + $0x18] sm:$0x1]
      %v179 = vld [vmem:[%s1] sm:$0xf]
      %v180 = vld [vmem:[%s1 + $0x4] sm:$0xf]
      %v181 = vld [vmem:[%s1 + $0x8] sm:$0xf]
      %v182 = vld [vmem:[%s1 + $0xc] sm:$0xf]
      %v183 = vld [vmem:[%s1 + $0x10] sm:$0x3]
      %v184 = vld [vmem:[%s2] sm:$0x1]
      %v186 = vperm.slane %v184, 0
      %v195 = vunpack.c.l.b16 %v172
      %v196 = vunpack.c.l.b16 %v173
      %v197 = vunpack.c.l.b16 %v174
      %v198 = vunpack.c.l.b16 %v175
      %v199 = vunpack.c.l.b16 %v176
      %v200 = vunpack.c.l.b16 %v177
      %v201 = vunpack.c.l.b16 %v178
      %v202 = vpack.c.b16 %v196, %v195
      %v203 = vpack.c.b16 %v198, %v197
      %v204 = vpack.c.b16 %v200, %v199
      %v205 = vpack.c.b16 %v201, %v201
      %v211 = vunpack.c.l.b16 %v179
      %v212 = vunpack.c.l.b16 %v180
      %v213 = vunpack.c.l.b16 %v181
      %v214 = vunpack.c.l.b16 %v182
      %v215 = vunpack.c.l.b16 %v183
      %v216 = vpack.c.b16 %v212, %v211
      %v217 = vpack.c.b16 %v214, %v213
      %v218 = vpack.c.b16 %v215, %v215
      %vm221 = vcmask 293888
      %v223 = vsel %vm221, %v202, 0
      %v226 = vsel %vm221, %v203, 0
      %v229 = vsel %vm221, %v204, 0
      %v232 = vsel %vm221, %v205, 0
      %vm234 = vcmask 1041408
      %v236 = vsel %vm234, %v218, 0
      %238 = vmatpush.bf16.msra.mxu0 0
      %239 = vmatpush.bf16.msra.mxu0 0
      %240 = vmatpush.bf16.msra.mxu0 0
      %241 = vmatpush.bf16.msra.mxu0 0
      %242 = vmatpush.bf16.msra.mxu0 0
      %243 = vmatpush.bf16.msra.mxu0 %v236
      %244 = vmatpush.bf16.msra.mxu0 %v217
      %245 = vmatpush.bf16.msra.mxu0 %v216
      %246 = vmatmul.bf16.gmra.mxu0 %v223
      %v247 = vpop.f32.mrf.mxu0
      %v248 = vadd.f32 %v186, %v247
      %v249 = vpop.f32.mrf.mxu0
      %v250 = vadd.f32 %v186, %v249
      %251 = vmatmul.bf16.gmra.mxu0 %v226
      %v252 = vpop.f32.mrf.mxu0
      %v253 = vadd.f32 %v186, %v252
      %v254 = vpop.f32.mrf.mxu0
      %v255 = vadd.f32 %v186, %v254
      %256 = vmatmul.bf16.gmra.mxu0 %v229
      %v257 = vpop.f32.mrf.mxu0
      %v258 = vadd.f32 %v186, %v257
      %v259 = vpop.f32.mrf.mxu0
      %v260 = vadd.f32 %v186, %v259
      %261 = vmatmul.bf16.gmra.mxu0 %v232
      %v262 = vpop.f32.mrf.mxu0
      %v263 = vadd.f32 %v186, %v262
      %v264 = vpop.f32.mrf.mxu0
      %265 = vdwg.mxu0
      %v266 = vmax.f32 %v248, 0.0
      %v267 = vmax.f32 %v250, 0.0
      %v268 = vmax.f32 %v253, 0.0
      %v269 = vmax.f32 %v255, 0.0
      %v270 = vmax.f32 %v258, 0.0
      %v271 = vmax.f32 %v260, 0.0
      %v272 = vmax.f32 %v263, 0.0
      %v273 = vpack.c.bf16 %v266, %v266
      %v274 = vpack.c.bf16 %v267, %v267
      %v275 = vpack.c.bf16 %v268, %v268
      %v276 = vpack.c.bf16 %v269, %v269
      %v277 = vpack.c.bf16 %v270, %v270
      %v278 = vpack.c.bf16 %v271, %v271
      %v279 = vpack.c.bf16 %v272, %v272
      %vm280 = vcmask 60416
      %281 = vst.msk [vmem:[%s170] sm:$0xf] %vm280, %v273
      %282 = vst.msk [vmem:[%s170 + $0x4] sm:$0xf] %vm280, %v274
      %283 = vst.msk [vmem:[%s170 + $0x8] sm:$0xf] %vm280, %v275
      %284 = vst.msk [vmem:[%s170 + $0xc] sm:$0xf] %vm280, %v276
      %285 = vst.msk [vmem:[%s170 + $0x10] sm:$0xf] %vm280, %v277
      %286 = vst.msk [vmem:[%s170 + $0x14] sm:$0xf] %vm280, %v278
      %vm287 = vcmask 57344
      %vm288 = vsmask.f32 256
      %vm289 = vmand %vm287, %vm288
      %v290 = vld [vmem:[%s170 + $0x18] sm:$0x1]
      %v291 = vsel %vm289, %v279, %v290
      %292 = vst [vmem:[%s170 + $0x18] sm:$0x1] %v291
      %vm293 = vcmask 60416
      %vm294 = vsmask.f32 7938
      %vm295 = vmand %vm293, %vm294
      %v296 = vld [vmem:[%s170 + $0x18] sm:$0xf]
      %v297 = vsel %vm295, 0, %v296
      %298 = vst [vmem:[%s170 + $0x18] sm:$0xf] %v297
      %v299 = vld [vmem:[%s170 + $0x1c] sm:$0x1]
      %v300 = vsel %vm289, 0, %v299
      %301 = vst [vmem:[%s170 + $0x1c] sm:$0x1] %v300
      %p302 = scmp.lt.s32.totalorder %s14, 1
      %s303 = scalar_select %p302, %s14, 1
      %s304 = smul.addr %s303, 8
      %s305 = smul.addr %s304, 4
      %s306 = scalar_lea.vmem %s3, %s305
      // Predicated region
      $region33: #{critic_forward.3} parent=31 // pred_check
        %p307 = pneg %p100
      $region34: #{critic_forward.3} parent=31 // pred_check_branch
        %309 = sbr.rel (%p307) target = $region36
      $region35: #{critic_forward.3} parent=31 // pred_region
        _
      $region36: #{critic_forward.3} parent=31 // pred_fallthru
        _
    $region32: #{critic_forward.3} parent=5 // pred_fallthru
      _
    %p310 = scmp.le.s32.totalorder 2, %s9
    // Predicated region
    $region37: #{critic_forward.3} parent=5 // pred_check
      %p311 = pneg %p310
    $region38: #{critic_forward.3} parent=5 // pred_check_branch
      %313 = sbr.rel (%p311) target = $region40
    $region39: #{critic_forward.3} parent=5 // pred_region
      %s314 = ssub.s32 %s9, 2
      // Predicated region
      $region41: #{critic_forward.3} parent=39 // pred_check
        %p315 = pneg %p106
      $region42: #{critic_forward.3} parent=39 // pred_check_branch
        %317 = sbr.rel (%p315) target = $region44
      $region43: #{critic_forward.3} parent=39 // pred_region
        %p318 = scmp.lt.s32.totalorder %s15, 1
        %s319 = scalar_select %p318, %s15, 1
        %s320 = smul.addr %s319, 8
        %s321 = smul.addr %s320, 4
        %s322 = scalar_lea.vmem %s3, %s321
      $region44: #{critic_forward.3} parent=39 // pred_fallthru
        _
    $region40: #{critic_forward.3} parent=5 // pred_fallthru
      _
  $region6: #{critic_forward.3} parent=0 // loop_footer
    %s13 = sadd.s32 1, %s9
  $region7: #{critic_forward.3} parent=0 // loop_footer_branch
    %8 = sbr.rel target = $region3
  $region8: #{critic_forward.3} parent=0 // loop_exit
    _

// kernel: critic_forward.4
$region0: #{critic_forward.4}
  #allocation0 [shape = 'u32[]', space=smem, size = 0x4, offset = 0x4, fixed_abs, tag = 'smem constant byte address 0x4 - core index']
  #allocation1 [shape = 'u32[72,128]{1,0:T(1,128)}', space=vmem, size = 0x9000, scoped, tag = 'internal scratch']
  %s0 = inlined_call_operand.vmem [shape: bf16[2,57,8], index: 0, kind: input, shape index: {}]
  %s1 = inlined_call_operand.vmem [shape: bf16[9,8,8], index: 1, kind: input, shape index: {}]
  %s2 = inlined_call_operand.vmem [shape: f32[1,8], index: 2, kind: input, shape index: {}]
  %s3 = inlined_call_operand.vmem [shape: bf16[2,43,8], index: 3, kind: output, shape index: {}]
  %s4 = sld [smem:[#allocation0]]
  $region45: #{critic_forward.4} parent=0
    _
  %s6 = ssub.s32 1, %s4
  %s7 = scalar_select 0, %s6, %s4
  loop: start=0, step=1, limit=4
  $region2: #{critic_forward.4} parent=0 // loop_pre_header
    _
  $region3: #{critic_forward.4} parent=0 // loop_header
    %s9 = sphi 0, %s13
    %p10 = scmp.ge.s32.totalorder %s9, 4
    %s19 = sphi 0, %s21
    %s22 = sphi 0, %s19
    %s23 = sphi 0, %s22
    %s39 = sphi 0, %s23
    %s43 = sphi 0, %s43
    %s45 = sphi 0, %s43
    %s46 = sphi 0, %s45
    %s60 = sphi 0, %s46
    %s64 = sphi 0, %s64
    %s66 = sphi 0, %s64
    %s67 = sphi 0, %s66
    %s81 = sphi 0, %s67
    %s87 = sphi 0, %s89
    %s90 = sphi 0, %s87
    %s91 = sphi 0, %s90
    %s107 = sphi 0, %s91
  $region4: #{critic_forward.4} parent=0 // loop_header_branch
    %12 = sbr.rel (%p10) target = $region8
  $region5: #{critic_forward.4} parent=0 // loop_body
    %s14 = ssub.s32 %s9, 1
    %s15 = ssub.s32 %s9, 2
    %s16 = sadd.s32 %s9, 1
    %s17 = ssub.s32 %s9, %s16
    %p18 = scmp.eq.s32.totalorder %s17, 0
    %s20 = sadd.s32 %s19, 1
    %s21 = scalar_select %p18, %s19, %s20
    %p24 = pneg %p18
    %p25 = scmp.eq.s32.totalorder %s9, 1
    %p26 = por %p24, %p25
    %p27 = scmp.ne.s32.totalorder %s19, %s22
    %p28 = scmp.eq.s32.totalorder %s9, 0
    %p29 = por %p27, %p28
    %p30 = scmp.ne.s32.totalorder %s19, %s22
    %p31 = scmp.eq.s32.totalorder %s14, 1
    %p32 = por %p30, %p31
    %p33 = scmp.ne.s32.totalorder %s22, %s23
    %p34 = scmp.eq.s32.totalorder %s14, 0
    %p35 = por %p33, %p34
    %p36 = scmp.ne.s32.totalorder %s22, %s23
    %p37 = scmp.eq.s32.totalorder %s15, 1
    %p38 = por %p36, %p37
    %p40 = scmp.ne.s32.totalorder %s23, %s39
    %p41 = scmp.eq.s32.totalorder %s15, 0
    %p42 = por %p40, %p41
    %s44 = sadd.s32 %s43, 1
    %p47 = scmp.eq.s32.totalorder %s9, 1
    %p48 = scmp.ne.s32.totalorder %s43, %s45
    %p49 = scmp.eq.s32.totalorder %s9, 0
    %p50 = por %p48, %p49
    %p51 = scmp.ne.s32.totalorder %s43, %s45
    %p52 = scmp.eq.s32.totalorder %s14, 1
    %p53 = por %p51, %p52
    %p54 = scmp.ne.s32.totalorder %s45, %s46
    %p55 = scmp.eq.s32.totalorder %s14, 0
    %p56 = por %p54, %p55
    %p57 = scmp.ne.s32.totalorder %s45, %s46
    %p58 = scmp.eq.s32.totalorder %s15, 1
    %p59 = por %p57, %p58
    %p61 = scmp.ne.s32.totalorder %s46, %s60
    %p62 = scmp.eq.s32.totalorder %s15, 0
    %p63 = por %p61, %p62
    %s65 = sadd.s32 %s64, 1
    %p68 = scmp.eq.s32.totalorder %s9, 1
    %p69 = scmp.ne.s32.totalorder %s64, %s66
    %p70 = scmp.eq.s32.totalorder %s9, 0
    %p71 = por %p69, %p70
    %p72 = scmp.ne.s32.totalorder %s64, %s66
    %p73 = scmp.eq.s32.totalorder %s14, 1
    %p74 = por %p72, %p73
    %p75 = scmp.ne.s32.totalorder %s66, %s67
    %p76 = scmp.eq.s32.totalorder %s14, 0
    %p77 = por %p75, %p76
    %p78 = scmp.ne.s32.totalorder %s66, %s67
    %p79 = scmp.eq.s32.totalorder %s15, 1
    %p80 = por %p78, %p79
    %p82 = scmp.ne.s32.totalorder %s67, %s81
    %p83 = scmp.eq.s32.totalorder %s15, 0
    %p84 = por %p82, %p83
    %s85 = ssub.s32 %s9, %s16
    %p86 = scmp.eq.s32.totalorder %s85, 0
    %s88 = sadd.s32 %s87, 1
    %s89 = scalar_select %p86, %s87, %s88
    %p92 = pneg %p86
    %p93 = scmp.eq.s32.totalorder %s9, 1
    %p94 = por %p92, %p93
    %p95 = scmp.ne.s32.totalorder %s87, %s90
    %p96 = scmp.eq.s32.totalorder %s9, 0
    %p97 = por %p95, %p96
    %p98 = scmp.ne.s32.totalorder %s87, %s90
    %p99 = scmp.eq.s32.totalorder %s14, 1
    %p100 = por %p98, %p99
    %p101 = scmp.ne.s32.totalorder %s90, %s91
    %p102 = scmp.eq.s32.totalorder %s14, 0
    %p103 = por %p101, %p102
    %p104 = scmp.ne.s32.totalorder %s90, %s91
    %p105 = scmp.eq.s32.totalorder %s15, 1
    %p106 = por %p104, %p105
    %p108 = scmp.ne.s32.totalorder %s91, %s107
    %p109 = scmp.eq.s32.totalorder %s15, 0
    %p110 = por %p108, %p109
    %p111 = scmp.le.s32.totalorder 1, %s9
    %p112 = scmp.lt.s32.totalorder %s9, 3
    %p113 = pnand %p111, %p112
    %p114 = pneg %p113
    // Predicated region
    $region9: #{critic_forward.4} parent=5 // pred_check
      _
    $region10: #{critic_forward.4} parent=5 // pred_check_branch
      %116 = sbr.rel (%p113) target = $region12
    $region11: #{critic_forward.4} parent=5 // pred_region
      %s117 = ssub.s32 %s9, 1
      // Predicated region
      $region13: #{critic_forward.4} parent=11 // pred_check
        %p118 = pneg %p56
      $region14: #{critic_forward.4} parent=11 // pred_check_branch
        %120 = sbr.rel (%p118) target = $region16
      $region15: #{critic_forward.4} parent=11 // pred_region
        _
      $region16: #{critic_forward.4} parent=11 // pred_fallthru
        _
      // Predicated region
      $region17: #{critic_forward.4} parent=11 // pred_check
        %p121 = pneg %p77
      $region18: #{critic_forward.4} parent=11 // pred_check_branch
        %123 = sbr.rel (%p121) target = $region20
      $region19: #{critic_forward.4} parent=11 // pred_region
        _
      $region20: #{critic_forward.4} parent=11 // pred_fallthru
        _
    $region12: #{critic_forward.4} parent=5 // pred_fallthru
      _
    %p124 = scmp.lt.s32.totalorder %s9, 2
    // Predicated region
    $region21: #{critic_forward.4} parent=5 // pred_check
      %p125 = pneg %p124
    $region22: #{critic_forward.4} parent=5 // pred_check_branch
      %127 = sbr.rel (%p125) target = $region24
    $region23: #{critic_forward.4} parent=5 // pred_region
      // Predicated region
      $region25: #{critic_forward.4} parent=23 // pred_check
        %p128 = pneg %p29
      $region26: #{critic_forward.4} parent=23 // pred_check_branch
        %130 = sbr.rel (%p128) target = $region28
      $region27: #{critic_forward.4} parent=23 // pred_region
        %p131 = scmp.lt.s32.totalorder %s9, 1
        %s132 = scalar_select %p131, %s9, 1
        %s133 = smul.addr %s132, 8
        %s134 = smul.addr %s133, 4
        %s135 = scalar_lea.vmem %s0, %s134
      $region28: #{critic_forward.4} parent=23 // pred_fallthru
        _
    $region24: #{critic_forward.4} parent=5 // pred_fallthru
      _
    %p136 = scmp.le.s32.totalorder 1, %s9
    %p137 = scmp.lt.s32.totalorder %s9, 3
    %p138 = pnand %p136, %p137
    %p139 = pneg %p138
    // Predicated region
    $region29: #{critic_forward.4} parent=5 // pred_check
      _
    $region30: #{critic_forward.4} parent=5 // pred_check_branch
      %141 = sbr.rel (%p138) target = $region32
    $region31: #{critic_forward.4} parent=5 // pred_region
      %s142 = ssub.s32 %s9, 1
      %p143 = scmp.lt.s32.totalorder %s14, 1
      %s144 = scalar_select %p143, %s14, 1
      %s145 = smul.addr %s144, 8
      %s146 = smul.addr %s145, 4
      %s147 = scalar_lea.vmem %s0, %s146
      %p148 = pneg %p35
      %p149 = pneg %p32
      %p150 = pneg %p56
      %p151 = pneg %p53
      %p152 = pneg %p77
      %p153 = pneg %p74
      %p154 = pneg %p103
      %p155 = pneg %p100
      %p156 = scmp.lt.s32.totalorder %s14, 1
      %s157 = scalar_select %p156, %s14, 1
      %s158 = smul.addr %s157, 6
      %s159 = smul.addr %s158, 4
      %s160 = scalar_lea.vmem %s3, %s159
      %p161 = scmp.lt.s32.totalorder %s14, 1
      %s162 = scalar_select %p161, %s14, 1
      %s163 = smul.addr %s162, 8
      %s164 = smul.addr %s163, 4
      %s165 = scalar_lea.vmem %s0, %s164
      %p166 = scmp.lt.s32.totalorder %s14, 1
      %s167 = scalar_select %p166, %s14, 1
      %s168 = smul.addr %s167, 6
      %s169 = smul.addr %s168, 4
      %s170 = scalar_lea.vmem %s3, %s169
      %v172 = vld [vmem:[%s165] sm:$0xf]
      %v173 = vld [vmem:[%s165 + $0x4] sm:$0xf]
      %v174 = vld [vmem:[%s165 + $0x8] sm:$0xf]
      %v175 = vld [vmem:[%s165 + $0xc] sm:$0xf]
      %v176 = vld [vmem:[%s165 + $0x10] sm:$0x3]
      %v177 = vld [vmem:[%s1] sm:$0xf]
      %s178 = scalar_lea.vmem %s1, 4
      %v179 = vld [vmem:[%s178] sm:$0xf]
      %v185 = vunpack.c.l.b16 %v172
      %v186 = vunpack.c.l.b16 %v173
      %v187 = vunpack.c.l.b16 %v174
      %v188 = vunpack.c.l.b16 %v175
      %v189 = vunpack.c.l.b16 %v176
      %v190 = vpack.c.b16 %v186, %v185
      %v191 = vpack.c.b16 %v188, %v187
      %v192 = vpack.c.b16 %v189, %v189
      %vm193 = vsmask.f32 7424
      %v195 = vshrl.u32 %v190, 16
      %v197 = vshll.u32 %v190, 16
      %v199 = vrot.slane %v197, 1
      %v200 = vor.u32 %v195, %v199
      %v202 = vshll.u32 %v191, 16
      %v204 = vrot.slane %v202, 1
      %v205 = vsel %vm193, %v200, %v204
      %v206 = vshrl.u32 %v191, 16
      %v208 = vor.u32 %v206, %v204
      %v210 = vshll.u32 %v192, 16
      %v212 = vrot.slane %v210, 1
      %v213 = vsel %vm193, %v208, %v212
      %v214 = vshrl.u32 %v192, 16
      %v216 = vor.u32 %v214, %v212
      %vm217 = vcmask 64512
      %v219 = vsel %vm217, %v205, 0
      %v222 = vsel %vm217, %v213, 0
      %v225 = vsel %vm217, %v216, 0
      %vm227 = vcmask 1043456
      %v229 = vsel %vm227, %v179, 0
      %231 = vmatpush.bf16.msra.mxu0 0
      %232 = vmatpush.bf16.msra.mxu0 0
      %233 = vmatpush.bf16.msra.mxu0 0
      %234 = vmatpush.bf16.msra.mxu0 0
      %235 = vmatpush.bf16.msra.mxu0 0
      %236 = vmatpush.bf16.msra.mxu0 0
      %237 = vmatpush.bf16.msra.mxu0 0
      %238 = vmatpush.bf16.msra.mxu0 %v229
      %239 = vmatmul.bf16.gmra.mxu0 %v219
      %v240 = vpop.f32.mrf.mxu0
      %v241 = vadd.f32 0.0, %v240
      %v242 = vpop.f32.mrf.mxu0
      %v243 = vadd.f32 0.0, %v242
      %244 = vmatmul.bf16.gmra.mxu0 %v222
      %v245 = vpop.f32.mrf.mxu0
      %v246 = vadd.f32 0.0, %v245
      %v247 = vpop.f32.mrf.mxu0
      %v248 = vadd.f32 0.0, %v247
      %249 = vmatmul.bf16.gmra.mxu0 %v225
      %v250 = vpop.f32.mrf.mxu0
      %v251 = vadd.f32 0.0, %v250
      %v252 = vpop.f32.mrf.mxu0
      %253 = vdwg.mxu0
      %v254 = vsel %vm217, %v190, 0
      %v256 = vsel %vm217, %v191, 0
      %v258 = vsel %vm217, %v192, 0
      %v261 = vsel %vm227, %v177, 0
      %263 = vmatpush.bf16.msra.mxu0 0
      %264 = vmatpush.bf16.msra.mxu0 0
      %265 = vmatpush.bf16.msra.mxu0 0
      %266 = vmatpush.bf16.msra.mxu0 0
      %267 = vmatpush.bf16.msra.mxu0 0
      %268 = vmatpush.bf16.msra.mxu0 0
      %269 = vmatpush.bf16.msra.mxu0 0
      %270 = vmatpush.bf16.msra.mxu0 %v261
      %271 = vmatmul.bf16.gmra.mxu0 %v254
      %v272 = vpop.f32.mrf.mxu0
      %v273 = vadd.f32 %v241, %v272
      %v274 = vpop.f32.mrf.mxu0
      %v275 = vadd.f32 %v243, %v274
      %276 = vmatmul.bf16.gmra.mxu0 %v256
      %v277 = vpop.f32.mrf.mxu0
      %v278 = vadd.f32 %v246, %v277
      %v279 = vpop.f32.mrf.mxu0
      %v280 = vadd.f32 %v248, %v279
      %281 = vmatmul.bf16.gmra.mxu0 %v258
      %v282 = vpop.f32.mrf.mxu0
      %v283 = vadd.f32 %v251, %v282
      %v284 = vpop.f32.mrf.mxu0
      %285 = vdwg.mxu0
      %v286 = vld [vmem:[%s165] sm:$0xe]
      %v287 = vld [vmem:[%s165 + $0x10] sm:$0x7]
      %s288 = scalar_lea.vmem %s1, 8
      %v289 = vld [vmem:[%s288] sm:$0xf]
      %v292 = vunpack.c.l.b16 %v286
      %v293 = vunpack.c.l.b16 %v287
      %v294 = vpack.c.b16 %v186, %v292
      %v295 = vpack.c.b16 %v293, %v293
      %vm296 = vcmask 1046528
      %v297 = vrot.slane %v294, 1
      %v298 = vrot.slane %v191, 1
      %v299 = vsel %vm296, %v297, %v298
      %v300 = vrot.slane %v295, 1
      %v301 = vsel %vm296, %v298, %v300
      %v303 = vsel %vm217, %v299, 0
      %v306 = vsel %vm217, %v301, 0
      %v309 = vsel %vm217, %v300, 0
      %v312 = vsel %vm227, %v289, 0
      %314 = vmatpush.bf16.msra.mxu0 0
      %315 = vmatpush.bf16.msra.mxu0 0
      %316 = vmatpush.bf16.msra.mxu0 0
      %317 = vmatpush.bf16.msra.mxu0 0
      %318 = vmatpush.bf16.msra.mxu0 0
      %319 = vmatpush.bf16.msra.mxu0 0
      %320 = vmatpush.bf16.msra.mxu0 0
      %321 = vmatpush.bf16.msra.mxu0 %v312
      %322 = vmatmul.bf16.gmra.mxu0 %v303
      %v323 = vpop.f32.mrf.mxu0
      %v324 = vadd.f32 0.0, %v323
      %v325 = vpop.f32.mrf.mxu0
      %v326 = vadd.f32 0.0, %v325
      %327 = vmatmul.bf16.gmra.mxu0 %v306
      %v328 = vpop.f32.mrf.mxu0
      %v329 = vadd.f32 0.0, %v328
      %v330 = vpop.f32.mrf.mxu0
      %v331 = vadd.f32 0.0, %v330
      %332 = vmatmul.bf16.gmra.mxu0 %v309
      %v333 = vpop.f32.mrf.mxu0
      %v334 = vadd.f32 0.0, %v333
      %v335 = vpop.f32.mrf.mxu0
      %336 = vdwg.mxu0
      %v337 = vadd.f32 %v273, %v324
      %v338 = vadd.f32 %v275, %v326
      %v339 = vadd.f32 %v278, %v329
      %v340 = vadd.f32 %v280, %v331
      %v341 = vadd.f32 %v283, %v334
      %v342 = vld [vmem:[%s165] sm:$0x8]
      %v343 = vld [vmem:[%s165 + $0x4] sm:$0xf]
      %v344 = vld [vmem:[%s165 + $0x8] sm:$0xf]
      %v345 = vld [vmem:[%s165 + $0xc] sm:$0xf]
      %v346 = vld [vmem:[%s165 + $0x10] sm:$0xf]
      %v347 = vld [vmem:[%s165 + $0x14] sm:$0x1]
      %s348 = scalar_lea.vmem %s1, 12
      %v349 = vld [vmem:[%s348] sm:$0xf]
      %v356 = vunpack.c.l.b16 %v342
      %v357 = vunpack.c.l.b16 %v343
      %v358 = vunpack.c.l.b16 %v344
      %v359 = vunpack.c.l.b16 %v345
      %v360 = vunpack.c.l.b16 %v346
      %v361 = vunpack.c.l.b16 %v347
      %v362 = vpack.c.b16 %v357, %v356
      %v363 = vpack.c.b16 %v359, %v358
      %v364 = vpack.c.b16 %v361, %v360
      %vm365 = vsmask.f32 4352
      %v367 = vshrl.u32 %v362, 16
      %v369 = vrot.slane %v367, 3
      %v370 = vshll.u32 %v362, 16
      %v372 = vrot.slane %v370, 4
      %v373 = vor.u32 %v369, %v372
      %v375 = vshrl.u32 %v363, 16
      %v377 = vrot.slane %v375, 3
      %v378 = vshll.u32 %v363, 16
      %v380 = vrot.slane %v378, 4
      %v381 = vor.u32 %v377, %v380
      %v382 = vsel %vm365, %v373, %v381
      %v384 = vshrl.u32 %v364, 16
      %v386 = vrot.slane %v384, 3
      %v387 = vshll.u32 %v364, 16
      %v389 = vrot.slane %v387, 4
      %v390 = vor.u32 %v386, %v389
      %v391 = vsel %vm365, %v381, %v390
      %v393 = vsel %vm217, %v382, 0
      %v396 = vsel %vm217, %v391, 0
      %v399 = vsel %vm217, %v390, 0
      %v402 = vsel %vm227, %v349, 0
      %404 = vmatpush.bf16.msra.mxu0 0
      %405 = vmatpush.bf16.msra.mxu0 0
      %406 = vmatpush.bf16.msra.mxu0 0
      %407 = vmatpush.bf16.msra.mxu0 0
      %408 = vmatpush.bf16.msra.mxu0 0
      %409 = vmatpush.bf16.msra.mxu0 0
      %410 = vmatpush.bf16.msra.mxu0 0
      %411 = vmatpush.bf16.msra.mxu0 %v402
      %412 = vmatmul.bf16.gmra.mxu0 %v393
      %v413 = vpop.f32.mrf.mxu0
      %v414 = vadd.f32 0.0, %v413
      %v415 = vpop.f32.mrf.mxu0
      %v416 = vadd.f32 0.0, %v415
      %417 = vmatmul.bf16.gmra.mxu0 %v396
      %v418 = vpop.f32.mrf.mxu0
      %v419 = vadd.f32 0.0, %v418
      %v420 = vpop.f32.mrf.mxu0
      %v421 = vadd.f32 0.0, %v420
      %422 = vmatmul.bf16.gmra.mxu0 %v399
      %v423 = vpop.f32.mrf.mxu0
      %v424 = vadd.f32 0.0, %v423
      %v425 = vpop.f32.mrf.mxu0
      %426 = vdwg.mxu0
      %v427 = vadd.f32 %v337, %v414
      %v428 = vadd.f32 %v338, %v416
      %v429 = vadd.f32 %v339, %v419
      %v430 = vadd.f32 %v340, %v421
      %v431 = vadd.f32 %v341, %v424
      %v432 = vld [vmem:[%s165 + $0x14] sm:$0x3]
      %s433 = scalar_lea.vmem %s1, 16
      %v434 = vld [vmem:[%s433] sm:$0xf]
      %v436 = vunpack.c.l.b16 %v432
      %v437 = vpack.c.b16 %v358, %v357
      %v438 = vpack.c.b16 %v360, %v359
      %v439 = vpack.c.b16 %v436, %v436
      %v441 = vsel %vm217, %v437, 0
      %v444 = vsel %vm217, %v438, 0
      %v447 = vsel %vm217, %v439, 0
      %v450 = vsel %vm227, %v434, 0
      %452 = vmatpush.bf16.msra.mxu0 0
      %453 = vmatpush.bf16.msra.mxu0 0
      %454 = vmatpush.bf16.msra.mxu0 0
      %455 = vmatpush.bf16.msra.mxu0 0
      %456 = vmatpush.bf16.msra.mxu0 0
      %457 = vmatpush.bf16.msra.mxu0 0
      %458 = vmatpush.bf16.msra.mxu0 0
      %459 = vmatpush.bf16.msra.mxu0 %v450
      %460 = vmatmul.bf16.gmra.mxu0 %v441
      %v461 = vpop.f32.mrf.mxu0
      %v462 = vadd.f32 0.0, %v461
      %v463 = vpop.f32.mrf.mxu0
      %v464 = vadd.f32 0.0, %v463
      %465 = vmatmul.bf16.gmra.mxu0 %v444
      %v466 = vpop.f32.mrf.mxu0
      %v467 = vadd.f32 0.0, %v466
      %v468 = vpop.f32.mrf.mxu0
      %v469 = vadd.f32 0.0, %v468
      %470 = vmatmul.bf16.gmra.mxu0 %v447
      %v471 = vpop.f32.mrf.mxu0
      %v472 = vadd.f32 0.0, %v471
      %v473 = vpop.f32.mrf.mxu0
      %474 = vdwg.mxu0
      %v475 = vadd.f32 %v427, %v462
      %v476 = vadd.f32 %v428, %v464
      %v477 = vadd.f32 %v429, %v467
      %v478 = vadd.f32 %v430, %v469
      %v479 = vadd.f32 %v431, %v472
      %s480 = scalar_lea.vmem %s1, 20
      %v481 = vld [vmem:[%s480] sm:$0xf]
      %v482 = vshrl.u32 %v437, 16
      %v484 = vshll.u32 %v437, 16
      %v486 = vrot.slane %v484, 1
      %v487 = vor.u32 %v482, %v486
      %v488 = vshll.u32 %v438, 16
      %v490 = vrot.slane %v488, 1
      %v491 = vsel %vm193, %v487, %v490
      %v492 = vshrl.u32 %v438, 16
      %v494 = vor.u32 %v492, %v490
      %v495 = vshll.u32 %v439, 16
      %v497 = vrot.slane %v495, 1
      %v498 = vsel %vm193, %v494, %v497
      %v499 = vshrl.u32 %v439, 16
      %v501 = vor.u32 %v499, %v497
      %v503 = vsel %vm217, %v491, 0
      %v506 = vsel %vm217, %v498, 0
      %v509 = vsel %vm217, %v501, 0
      %v512 = vsel %vm227, %v481, 0
      %514 = vmatpush.bf16.msra.mxu0 0
      %515 = vmatpush.bf16.msra.mxu0 0
      %516 = vmatpush.bf16.msra.mxu0 0
      %517 = vmatpush.bf16.msra.mxu0 0
      %518 = vmatpush.bf16.msra.mxu0 0
      %519 = vmatpush.bf16.msra.mxu0 0
      %520 = vmatpush.bf16.msra.mxu0 0
      %521 = vmatpush.bf16.msra.mxu0 %v512
      %522 = vmatmul.bf16.gmra.mxu0 %v503
      %v523 = vpop.f32.mrf.mxu0
      %v524 = vadd.f32 0.0, %v523
      %v525 = vpop.f32.mrf.mxu0
      %v526 = vadd.f32 0.0, %v525
      %527 = vmatmul.bf16.gmra.mxu0 %v506
      %v528 = vpop.f32.mrf.mxu0
      %v529 = vadd.f32 0.0, %v528
      %v530 = vpop.f32.mrf.mxu0
      %v531 = vadd.f32 0.0, %v530
      %532 = vmatmul.bf16.gmra.mxu0 %v509
      %v533 = vpop.f32.mrf.mxu0
      %v534 = vadd.f32 0.0, %v533
      %v535 = vpop.f32.mrf.mxu0
      %536 = vdwg.mxu0
      %v537 = vadd.f32 %v475, %v524
      %v538 = vadd.f32 %v476, %v526
      %v539 = vadd.f32 %v477, %v529
      %v540 = vadd.f32 %v478, %v531
      %v541 = vadd.f32 %v479, %v534
      %v542 = vld [vmem:[%s165 + $0x4] sm:$0x8]
      %v543 = vld [vmem:[%s165 + $0x8] sm:$0xf]
      %v544 = vld [vmem:[%s165 + $0xc] sm:$0xf]
      %v545 = vld [vmem:[%s165 + $0x10] sm:$0xf]
      %v546 = vld [vmem:[%s165 + $0x14] sm:$0xf]
      %v547 = vld [vmem:[%s165 + $0x18] sm:$0x1]
      %s548 = scalar_lea.vmem %s1, 24
      %v549 = vld [vmem:[%s548] sm:$0xf]
      %v556 = vunpack.c.l.b16 %v542
      %v557 = vunpack.c.l.b16 %v543
      %v558 = vunpack.c.l.b16 %v544
      %v559 = vunpack.c.l.b16 %v545
      %v560 = vunpack.c.l.b16 %v546
      %v561 = vunpack.c.l.b16 %v547
      %v562 = vpack.c.b16 %v557, %v556
      %v563 = vpack.c.b16 %v559, %v558
      %v564 = vpack.c.b16 %v561, %v560
      %vm565 = vcmask 1044480
      %v566 = vrot.slane %v562, 3
      %v567 = vrot.slane %v563, 3
      %v568 = vsel %vm565, %v566, %v567
      %v569 = vrot.slane %v564, 3
      %v570 = vsel %vm565, %v567, %v569
      %v572 = vsel %vm217, %v568, 0
      %v575 = vsel %vm217, %v570, 0
      %v578 = vsel %vm217, %v569, 0
      %v581 = vsel %vm227, %v549, 0
      %583 = vmatpush.bf16.msra.mxu0 0
      %584 = vmatpush.bf16.msra.mxu0 0
      %585 = vmatpush.bf16.msra.mxu0 0
      %586 = vmatpush.bf16.msra.mxu0 0
      %587 = vmatpush.bf16.msra.mxu0 0
      %588 = vmatpush.bf16.msra.mxu0 0
      %589 = vmatpush.bf16.msra.mxu0 0
      %590 = vmatpush.bf16.msra.mxu0 %v581
      %591 = vmatmul.bf16.gmra.mxu0 %v572
      %v592 = vpop.f32.mrf.mxu0
      %v593 = vadd.f32 0.0, %v592
      %v594 = vpop.f32.mrf.mxu0
      %v595 = vadd.f32 0.0, %v594
      %596 = vmatmul.bf16.gmra.mxu0 %v575
      %v597 = vpop.f32.mrf.mxu0
      %v598 = vadd.f32 0.0, %v597
      %v599 = vpop.f32.mrf.mxu0
      %v600 = vadd.f32 0.0, %v599
      %601 = vmatmul.bf16.gmra.mxu0 %v578
      %v602 = vpop.f32.mrf.mxu0
      %v603 = vadd.f32 0.0, %v602
      %v604 = vpop.f32.mrf.mxu0
      %605 = vdwg.mxu0
      %v606 = vadd.f32 %v537, %v593
      %v607 = vadd.f32 %v538, %v595
      %v608 = vadd.f32 %v539, %v598
      %v609 = vadd.f32 %v540, %v600
      %v610 = vadd.f32 %v541, %v603
      %s611 = scalar_lea.vmem %s1, 28
      %v612 = vld [vmem:[%s611] sm:$0xf]
      %v614 = vshrl.u32 %v562, 16
      %v616 = vrot.slane %v614, 3
      %v617 = vshll.u32 %v562, 16
      %v619 = vrot.slane %v617, 4
      %v620 = vor.u32 %v616, %v619
      %v622 = vshrl.u32 %v563, 16
      %v624 = vrot.slane %v622, 3
      %v625 = vshll.u32 %v563, 16
      %v627 = vrot.slane %v625, 4
      %v628 = vor.u32 %v624, %v627
      %v629 = vsel %vm365, %v620, %v628
      %v631 = vshrl.u32 %v564, 16
      %v633 = vrot.slane %v631, 3
      %v634 = vshll.u32 %v564, 16
      %v636 = vrot.slane %v634, 4
      %v637 = vor.u32 %v633, %v636
      %v638 = vsel %vm365, %v628, %v637
      %v640 = vsel %vm217, %v629, 0
      %v643 = vsel %vm217, %v638, 0
      %v646 = vsel %vm217, %v637, 0
      %v649 = vsel %vm227, %v612, 0
      %651 = vmatpush.bf16.msra.mxu0 0
      %652 = vmatpush.bf16.msra.mxu0 0
      %653 = vmatpush.bf16.msra.mxu0 0
      %654 = vmatpush.bf16.msra.mxu0 0
      %655 = vmatpush.bf16.msra.mxu0 0
      %656 = vmatpush.bf16.msra.mxu0 0
      %657 = vmatpush.bf16.msra.mxu0 0
      %658 = vmatpush.bf16.msra.mxu0 %v649
      %659 = vmatmul.bf16.gmra.mxu0 %v640
      %v660 = vpop.f32.mrf.mxu0
      %v661 = vadd.f32 0.0, %v660
      %v662 = vpop.f32.mrf.mxu0
      %v663 = vadd.f32 0.0, %v662
      %664 = vmatmul.bf16.gmra.mxu0 %v643
      %v665 = vpop.f32.mrf.mxu0
      %v666 = vadd.f32 0.0, %v665
      %v667 = vpop.f32.mrf.mxu0
      %v668 = vadd.f32 0.0, %v667
      %669 = vmatmul.bf16.gmra.mxu0 %v646
      %v670 = vpop.f32.mrf.mxu0
      %v671 = vadd.f32 0.0, %v670
      %v672 = vpop.f32.mrf.mxu0
      %673 = vdwg.mxu0
      %v674 = vadd.f32 %v606, %v661
      %v675 = vadd.f32 %v607, %v663
      %v676 = vadd.f32 %v608, %v666
      %v677 = vadd.f32 %v609, %v668
      %v678 = vadd.f32 %v610, %v671
      %v679 = vld [vmem:[%s165 + $0x18] sm:$0x3]
      %s680 = scalar_lea.vmem %s1, 32
      %v681 = vld [vmem:[%s680] sm:$0xf]
      %v683 = vunpack.c.l.b16 %v679
      %v684 = vpack.c.b16 %v558, %v557
      %v685 = vpack.c.b16 %v560, %v559
      %v686 = vpack.c.b16 %v683, %v683
      %v688 = vsel %vm217, %v684, 0
      %v691 = vsel %vm217, %v685, 0
      %v694 = vsel %vm217, %v686, 0
      %v697 = vsel %vm227, %v681, 0
      %699 = vmatpush.bf16.msra.mxu0 0
      %700 = vmatpush.bf16.msra.mxu0 0
      %701 = vmatpush.bf16.msra.mxu0 0
      %702 = vmatpush.bf16.msra.mxu0 0
      %703 = vmatpush.bf16.msra.mxu0 0
      %704 = vmatpush.bf16.msra.mxu0 0
      %705 = vmatpush.bf16.msra.mxu0 0
      %706 = vmatpush.bf16.msra.mxu0 %v697
      %707 = vmatmul.bf16.gmra.mxu0 %v688
      %v708 = vpop.f32.mrf.mxu0
      %v709 = vadd.f32 0.0, %v708
      %v710 = vpop.f32.mrf.mxu0
      %v711 = vadd.f32 0.0, %v710
      %712 = vmatmul.bf16.gmra.mxu0 %v691
      %v713 = vpop.f32.mrf.mxu0
      %v714 = vadd.f32 0.0, %v713
      %v715 = vpop.f32.mrf.mxu0
      %v716 = vadd.f32 0.0, %v715
      %717 = vmatmul.bf16.gmra.mxu0 %v694
      %v718 = vpop.f32.mrf.mxu0
      %v719 = vadd.f32 0.0, %v718
      %v720 = vpop.f32.mrf.mxu0
      %721 = vdwg.mxu0
      %v722 = vadd.f32 %v674, %v709
      %v723 = vadd.f32 %v675, %v711
      %v724 = vadd.f32 %v676, %v714
      %v725 = vadd.f32 %v677, %v716
      %v726 = vadd.f32 %v678, %v719
      %v727 = vld [vmem:[%s2] sm:$0x1]
      %v729 = vperm.slane %v727, 0
      %v731 = vadd.f32 %v722, %v729
      %v732 = vadd.f32 %v723, %v729
      %v733 = vadd.f32 %v724, %v729
      %v734 = vadd.f32 %v725, %v729
      %v735 = vadd.f32 %v726, %v729
      %v736 = vmax.f32 %v731, 0.0
      %v737 = vmax.f32 %v732, 0.0
      %v738 = vmax.f32 %v733, 0.0
      %v739 = vmax.f32 %v734, 0.0
      %v740 = vmax.f32 %v735, 0.0
      %v741 = vpack.c.bf16 %v736, %v736
      %v742 = vpack.c.bf16 %v737, %v737
      %v743 = vpack.c.bf16 %v738, %v738
      %v744 = vpack.c.bf16 %v739, %v739
      %v745 = vpack.c.bf16 %v740, %v740
      %vm746 = vcmask 60416
      %747 = vst.msk [vmem:[%s170] sm:$0xf] %vm746, %v741
      %748 = vst.msk [vmem:[%s170 + $0x4] sm:$0xf] %vm746, %v742
      %749 = vst.msk [vmem:[%s170 + $0x8] sm:$0xf] %vm746, %v743
      %750 = vst.msk [vmem:[%s170 + $0xc] sm:$0xf] %vm746, %v744
      %vm751 = vcmask 58368
      %vm752 = vsmask.f32 1280
      %vm753 = vmand %vm751, %vm752
      %v754 = vld [vmem:[%s170 + $0x10] sm:$0x3]
      %v755 = vsel %vm753, %v745, %v754
      %756 = vst [vmem:[%s170 + $0x10] sm:$0x3] %v755
      %vm757 = vcmask 60417
      %vm758 = vsmask.f32 7942
      %vm759 = vmand %vm757, %vm758
      %v760 = vld [vmem:[%s170 + $0x10] sm:$0xe]
      %v761 = vsel %vm759, 0, %v760
      %762 = vst [vmem:[%s170 + $0x10] sm:$0xe] %v761
      %v763 = vld [vmem:[%s170 + $0x14] sm:$0x3]
      %v764 = vsel %vm753, 0, %v763
      %765 = vst [vmem:[%s170 + $0x14] sm:$0x3] %v764
      %p766 = scmp.lt.s32.totalorder %s14, 1
      %s767 = scalar_select %p766, %s14, 1
      %s768 = smul.addr %s767, 6
      %s769 = smul.addr %s768, 4
      %s770 = scalar_lea.vmem %s3, %s769
      // Predicated region
      $region33: #{critic_forward.4} parent=31 // pred_check
        %p771 = pneg %p100
      $region34: #{critic_forward.4} parent=31 // pred_check_branch
        %773 = sbr.rel (%p771) target = $region36
      $region35: #{critic_forward.4} parent=31 // pred_region
        _
      $region36: #{critic_forward.4} parent=31 // pred_fallthru
        _
    $region32: #{critic_forward.4} parent=5 // pred_fallthru
      _
    %p774 = scmp.le.s32.totalorder 2, %s9
    // Predicated region
    $region37: #{critic_forward.4} parent=5 // pred_check
      %p775 = pneg %p774
    $region38: #{critic_forward.4} parent=5 // pred_check_branch
      %777 = sbr.rel (%p775) target = $region40
    $region39: #{critic_forward.4} parent=5 // pred_region
      %s778 = ssub.s32 %s9, 2
      // Predicated region
      $region41: #{critic_forward.4} parent=39 // pred_check
        %p779 = pneg %p106
      $region42: #{critic_forward.4} parent=39 // pred_check_branch
        %781 = sbr.rel (%p779) target = $region44
      $region43: #{critic_forward.4} parent=39 // pred_region
        %p782 = scmp.lt.s32.totalorder %s15, 1
        %s783 = scalar_select %p782, %s15, 1
        %s784 = smul.addr %s783, 6
        %s785 = smul.addr %s784, 4
        %s786 = scalar_lea.vmem %s3, %s785
      $region44: #{critic_forward.4} parent=39 // pred_fallthru
        _
    $region40: #{critic_forward.4} parent=5 // pred_fallthru
      _
  $region6: #{critic_forward.4} parent=0 // loop_footer
    %s13 = sadd.s32 1, %s9
  $region7: #{critic_forward.4} parent=0 // loop_footer_branch
    %8 = sbr.rel target = $region3
  $region8: #{critic_forward.4} parent=0 // loop_exit
    _

// kernel: critic_forward.5
$region0: #{critic_forward.5}
  #allocation0 [shape = 'u32[]', space=smem, size = 0x4, offset = 0x4, fixed_abs, tag = 'smem constant byte address 0x4 - core index']
  #allocation1 [shape = 'u32[72,128]{1,0:T(1,128)}', space=vmem, size = 0x9000, scoped, tag = 'internal scratch']
  #allocation2 [shape = 'f32[2,32]{1,0:T(2,128)}', space=vmem, size = 0x400, scoped, tag = 'scratch operand']
  #allocation3 [shape = 'f32[1,1]{1,0:T(1,128)S(1)}', space=vmem, size = 0x200, scoped, tag = 'scoped memory for critic_forward.5']
  #allocation4 [shape = 'f32[1,1]{1,0:T(1,128)S(1)}', space=vmem, size = 0x200, scoped, tag = 'scoped memory for critic_forward.5']
  %s0 = inlined_call_operand.vmem [shape: bf16[2,256], index: 0, kind: input, shape index: {}]
  %s1 = inlined_call_operand.vmem [shape: bf16[2,4], index: 1, kind: input, shape index: {}]
  %s2 = inlined_call_operand.vmem [shape: bf16[256,32], index: 2, kind: input, shape index: {}]
  %s3 = inlined_call_operand.vmem [shape: f32[1,32], index: 3, kind: input, shape index: {}]
  %s4 = inlined_call_operand.vmem [shape: f32[1,32], index: 4, kind: input, shape index: {}]
  %s5 = inlined_call_operand.vmem [shape: f32[1,32], index: 5, kind: input, shape index: {}]
  %s6 = inlined_call_operand.vmem [shape: bf16[32,32], index: 6, kind: input, shape index: {}]
  %s7 = inlined_call_operand.vmem [shape: bf16[4,32], index: 7, kind: input, shape index: {}]
  %s8 = inlined_call_operand.vmem [shape: f32[1,32], index: 8, kind: input, shape index: {}]
  %s9 = inlined_call_operand.vmem [shape: bf16[32,32], index: 9, kind: input, shape index: {}]
  %s10 = inlined_call_operand.vmem [shape: f32[1,32], index: 10, kind: input, shape index: {}]
  %s11 = inlined_call_operand.vmem [shape: f32[1,32], index: 11, kind: input, shape index: {}]
  %s12 = inlined_call_operand.<no memory space> [shape: f32[1,1], index: 12, kind: input, shape index: {}]
  %s13 = inlined_call_operand.vmem [shape: bf16[32,32], index: 13, kind: input, shape index: {}]
  %s14 = inlined_call_operand.vmem [shape: bf16[4,32], index: 14, kind: input, shape index: {}]
  %s15 = inlined_call_operand.vmem [shape: f32[1,32], index: 15, kind: input, shape index: {}]
  %s16 = inlined_call_operand.vmem [shape: bf16[32,32], index: 16, kind: input, shape index: {}]
  %s17 = inlined_call_operand.vmem [shape: f32[1,32], index: 17, kind: input, shape index: {}]
  %s18 = inlined_call_operand.vmem [shape: f32[1,32], index: 18, kind: input, shape index: {}]
  %s19 = inlined_call_operand.<no memory space> [shape: f32[1,1], index: 19, kind: input, shape index: {}]
  %s20 = inlined_call_operand.vmem [shape: f32[2,2], index: 20, kind: output, shape index: {}]
  %s21 = sld [smem:[#allocation0]]
  $region98: #{critic_forward.5} parent=0
    _
  %s23 = ssub.s32 1, %s21
  %s24 = scalar_select 0, %s23, %s21
  %v25 = vstv %s12
  %26 = vst [vmem:[#allocation3] sm:$0x1] %v25
  %v27 = vstv %s19
  %28 = vst [vmem:[#allocation4] sm:$0x1] %v27
  // Predicated region
  $region2: #{critic_forward.5} parent=0 // pred_check
    _
  $region3: #{critic_forward.5} parent=0 // pred_check_branch
    %30 = sbr.rel (0) target = $region5
  $region4: #{critic_forward.5} parent=0 // pred_region
    _
  $region5: #{critic_forward.5} parent=0 // pred_fallthru
    _
  // Predicated region
  $region6: #{critic_forward.5} parent=0 // pred_check
    _
  $region7: #{critic_forward.5} parent=0 // pred_check_branch
    %32 = sbr.rel (0) target = $region9
  $region8: #{critic_forward.5} parent=0 // pred_region
    _
  $region9: #{critic_forward.5} parent=0 // pred_fallthru
    _
  // Predicated region
  $region10: #{critic_forward.5} parent=0 // pred_check
    _
  $region11: #{critic_forward.5} parent=0 // pred_check_branch
    %34 = sbr.rel (0) target = $region13
  $region12: #{critic_forward.5} parent=0 // pred_region
    _
  $region13: #{critic_forward.5} parent=0 // pred_fallthru
    _
  // Predicated region
  $region14: #{critic_forward.5} parent=0 // pred_check
    _
  $region15: #{critic_forward.5} parent=0 // pred_check_branch
    %36 = sbr.rel (0) target = $region17
  $region16: #{critic_forward.5} parent=0 // pred_region
    _
  $region17: #{critic_forward.5} parent=0 // pred_fallthru
    _
  // Predicated region
  $region18: #{critic_forward.5} parent=0 // pred_check
    _
  $region19: #{critic_forward.5} parent=0 // pred_check_branch
    %38 = sbr.rel (0) target = $region21
  $region20: #{critic_forward.5} parent=0 // pred_region
    _
  $region21: #{critic_forward.5} parent=0 // pred_fallthru
    _
  // Predicated region
  $region22: #{critic_forward.5} parent=0 // pred_check
    _
  $region23: #{critic_forward.5} parent=0 // pred_check_branch
    %40 = sbr.rel (0) target = $region25
  $region24: #{critic_forward.5} parent=0 // pred_region
    _
  $region25: #{critic_forward.5} parent=0 // pred_fallthru
    _
  // Predicated region
  $region26: #{critic_forward.5} parent=0 // pred_check
    _
  $region27: #{critic_forward.5} parent=0 // pred_check_branch
    %42 = sbr.rel (0) target = $region29
  $region28: #{critic_forward.5} parent=0 // pred_region
    _
  $region29: #{critic_forward.5} parent=0 // pred_fallthru
    _
  // Predicated region
  $region30: #{critic_forward.5} parent=0 // pred_check
    _
  $region31: #{critic_forward.5} parent=0 // pred_check_branch
    %44 = sbr.rel (0) target = $region33
  $region32: #{critic_forward.5} parent=0 // pred_region
    _
  $region33: #{critic_forward.5} parent=0 // pred_fallthru
    _
  // Predicated region
  $region34: #{critic_forward.5} parent=0 // pred_check
    _
  $region35: #{critic_forward.5} parent=0 // pred_check_branch
    %46 = sbr.rel (0) target = $region37
  $region36: #{critic_forward.5} parent=0 // pred_region
    _
  $region37: #{critic_forward.5} parent=0 // pred_fallthru
    _
  // Predicated region
  $region38: #{critic_forward.5} parent=0 // pred_check
    _
  $region39: #{critic_forward.5} parent=0 // pred_check_branch
    %48 = sbr.rel (0) target = $region41
  $region40: #{critic_forward.5} parent=0 // pred_region
    _
  $region41: #{critic_forward.5} parent=0 // pred_fallthru
    _
  // Predicated region
  $region42: #{critic_forward.5} parent=0 // pred_check
    _
  $region43: #{critic_forward.5} parent=0 // pred_check_branch
    %50 = sbr.rel (0) target = $region45
  $region44: #{critic_forward.5} parent=0 // pred_region
    _
  $region45: #{critic_forward.5} parent=0 // pred_fallthru
    _
  // Predicated region
  $region46: #{critic_forward.5} parent=0 // pred_check
    _
  $region47: #{critic_forward.5} parent=0 // pred_check_branch
    %52 = sbr.rel (0) target = $region49
  $region48: #{critic_forward.5} parent=0 // pred_region
    _
  $region49: #{critic_forward.5} parent=0 // pred_fallthru
    _
  // Predicated region
  $region50: #{critic_forward.5} parent=0 // pred_check
    _
  $region51: #{critic_forward.5} parent=0 // pred_check_branch
    %54 = sbr.rel (0) target = $region53
  $region52: #{critic_forward.5} parent=0 // pred_region
    _
  $region53: #{critic_forward.5} parent=0 // pred_fallthru
    _
  // Predicated region
  $region54: #{critic_forward.5} parent=0 // pred_check
    _
  $region55: #{critic_forward.5} parent=0 // pred_check_branch
    %56 = sbr.rel (0) target = $region57
  $region56: #{critic_forward.5} parent=0 // pred_region
    _
  $region57: #{critic_forward.5} parent=0 // pred_fallthru
    _
  // Predicated region
  $region58: #{critic_forward.5} parent=0 // pred_check
    _
  $region59: #{critic_forward.5} parent=0 // pred_check_branch
    %58 = sbr.rel (0) target = $region61
  $region60: #{critic_forward.5} parent=0 // pred_region
    _
  $region61: #{critic_forward.5} parent=0 // pred_fallthru
    _
  // Predicated region
  $region62: #{critic_forward.5} parent=0 // pred_check
    _
  $region63: #{critic_forward.5} parent=0 // pred_check_branch
    %60 = sbr.rel (0) target = $region65
  $region64: #{critic_forward.5} parent=0 // pred_region
    _
  $region65: #{critic_forward.5} parent=0 // pred_fallthru
    _
  // Predicated region
  $region66: #{critic_forward.5} parent=0 // pred_check
    _
  $region67: #{critic_forward.5} parent=0 // pred_check_branch
    %62 = sbr.rel (0) target = $region69
  $region68: #{critic_forward.5} parent=0 // pred_region
    _
  $region69: #{critic_forward.5} parent=0 // pred_fallthru
    _
  // Predicated region
  $region70: #{critic_forward.5} parent=0 // pred_check
    _
  $region71: #{critic_forward.5} parent=0 // pred_check_branch
    %64 = sbr.rel (0) target = $region73
  $region72: #{critic_forward.5} parent=0 // pred_region
    _
  $region73: #{critic_forward.5} parent=0 // pred_fallthru
    _
  // Predicated region
  $region74: #{critic_forward.5} parent=0 // pred_check
    _
  $region75: #{critic_forward.5} parent=0 // pred_check_branch
    %66 = sbr.rel (0) target = $region77
  $region76: #{critic_forward.5} parent=0 // pred_region
    _
  $region77: #{critic_forward.5} parent=0 // pred_fallthru
    _
  // Predicated region
  $region78: #{critic_forward.5} parent=0 // pred_check
    _
  $region79: #{critic_forward.5} parent=0 // pred_check_branch
    %68 = sbr.rel (0) target = $region81
  $region80: #{critic_forward.5} parent=0 // pred_region
    _
  $region81: #{critic_forward.5} parent=0 // pred_fallthru
    _
  %p70 = scmp.eq.s32.totalorder 0, 0
  // Predicated region
  $region82: #{critic_forward.5} parent=0 // pred_check
    %p71 = pneg %p70
  $region83: #{critic_forward.5} parent=0 // pred_check_branch
    %73 = sbr.rel (%p71) target = $region85
  $region84: #{critic_forward.5} parent=0 // pred_region
    %vm74 = vcmask 254976
    %75 = vst.msk [vmem:[#allocation2] sm:$0x3] %vm74, 0.0
  $region85: #{critic_forward.5} parent=0 // pred_fallthru
    _
  %v76 = vld [vmem:[#allocation2] sm:$0x3]
  %v77 = vld [vmem:[%s0] sm:$0x3]
  %v78 = vld [vmem:[%s2] sm:$0xf]
  %v79 = vld [vmem:[%s2 + $0x4] sm:$0xf]
  %v80 = vld [vmem:[%s2 + $0x8] sm:$0xf]
  %v81 = vld [vmem:[%s2 + $0xc] sm:$0xf]
  %v82 = vld [vmem:[%s2 + $0x10] sm:$0xf]
  %v83 = vld [vmem:[%s2 + $0x14] sm:$0xf]
  %v84 = vld [vmem:[%s2 + $0x18] sm:$0xf]
  %v85 = vld [vmem:[%s2 + $0x1c] sm:$0xf]
  %v86 = vld [vmem:[%s2 + $0x20] sm:$0xf]
  %v87 = vld [vmem:[%s2 + $0x24] sm:$0xf]
  %v88 = vld [vmem:[%s2 + $0x28] sm:$0xf]
  %v89 = vld [vmem:[%s2 + $0x2c] sm:$0xf]
  %v90 = vld [vmem:[%s2 + $0x30] sm:$0xf]
  %v91 = vld [vmem:[%s2 + $0x34] sm:$0xf]
  %v92 = vld [vmem:[%s2 + $0x38] sm:$0xf]
  %v93 = vld [vmem:[%s2 + $0x3c] sm:$0xf]
  %v94 = vld [vmem:[%s2 + $0x40] sm:$0xf]
  %v95 = vld [vmem:[%s2 + $0x44] sm:$0xf]
  %v96 = vld [vmem:[%s2 + $0x48] sm:$0xf]
  %v97 = vld [vmem:[%s2 + $0x4c] sm:$0xf]
  %v98 = vld [vmem:[%s2 + $0x50] sm:$0xf]
  %v99 = vld [vmem:[%s2 + $0x54] sm:$0xf]
  %v100 = vld [vmem:[%s2 + $0x58] sm:$0xf]
  %v101 = vld [vmem:[%s2 + $0x5c] sm:$0xf]
  %v102 = vld [vmem:[%s2 + $0x60] sm:$0xf]
  %v103 = vld [vmem:[%s2 + $0x64] sm:$0xf]
  %v104 = vld [vmem:[%s2 + $0x68] sm:$0xf]
  %v105 = vld [vmem:[%s2 + $0x6c] sm:$0xf]
  %v106 = vld [vmem:[%s2 + $0x70] sm:$0xf]
  %v107 = vld [vmem:[%s2 + $0x74] sm:$0xf]
  %v108 = vld [vmem:[%s2 + $0x78] sm:$0xf]
  %v109 = vld [vmem:[%s2 + $0x7c] sm:$0xf]
  %111 = vst [vmem:[#allocation1] ss:$9 sm:$0xff] %v77
  %v112 = vld [vmem:[#allocation1] sm:$0xff]
  %v113 = vld [vmem:[#allocation1 + $0x9] sm:$0xff]
  %v148 = vunpack.c.l.b16 %v78
  %v149 = vunpack.c.l.b16 %v79
  %v150 = vunpack.c.l.b16 %v80
  %v151 = vunpack.c.l.b16 %v81
  %v152 = vunpack.c.l.b16 %v82
  %v153 = vunpack.c.l.b16 %v83
  %v154 = vunpack.c.l.b16 %v84
  %v155 = vunpack.c.l.b16 %v85
  %v156 = vunpack.c.l.b16 %v86
  %v157 = vunpack.c.l.b16 %v87
  %v158 = vunpack.c.l.b16 %v88
  %v159 = vunpack.c.l.b16 %v89
  %v160 = vunpack.c.l.b16 %v90
  %v161 = vunpack.c.l.b16 %v91
  %v162 = vunpack.c.l.b16 %v92
  %v163 = vunpack.c.l.b16 %v93
  %v164 = vunpack.c.l.b16 %v94
  %v165 = vunpack.c.l.b16 %v95
  %v166 = vunpack.c.l.b16 %v96
  %v167 = vunpack.c.l.b16 %v97
  %v168 = vunpack.c.l.b16 %v98
  %v169 = vunpack.c.l.b16 %v99
  %v170 = vunpack.c.l.b16 %v100
  %v171 = vunpack.c.l.b16 %v101
  %v172 = vunpack.c.l.b16 %v102
  %v173 = vunpack.c.l.b16 %v103
  %v174 = vunpack.c.l.b16 %v104
  %v175 = vunpack.c.l.b16 %v105
  %v176 = vunpack.c.l.b16 %v106
  %v177 = vunpack.c.l.b16 %v107
  %v178 = vunpack.c.l.b16 %v108
  %v179 = vunpack.c.l.b16 %v109
  %v180 = vpack.c.b16 %v149, %v148
  %v181 = vpack.c.b16 %v151, %v150
  %v182 = vpack.c.b16 %v153, %v152
  %v183 = vpack.c.b16 %v155, %v154
  %v184 = vpack.c.b16 %v157, %v156
  %v185 = vpack.c.b16 %v159, %v158
  %v186 = vpack.c.b16 %v161, %v160
  %v187 = vpack.c.b16 %v163, %v162
  %v188 = vpack.c.b16 %v165, %v164
  %v189 = vpack.c.b16 %v167, %v166
  %v190 = vpack.c.b16 %v169, %v168
  %v191 = vpack.c.b16 %v171, %v170
  %v192 = vpack.c.b16 %v173, %v172
  %v193 = vpack.c.b16 %v175, %v174
  %v194 = vpack.c.b16 %v177, %v176
  %v195 = vpack.c.b16 %v179, %v178
  %212 = vmatpush.bf16.msra.mxu0 %v187
  %213 = vmatpush.bf16.msra.mxu0 %v186
  %214 = vmatpush.bf16.msra.mxu0 %v185
  %215 = vmatpush.bf16.msra.mxu0 %v184
  %216 = vmatpush.bf16.msra.mxu0 %v183
  %217 = vmatpush.bf16.msra.mxu0 %v182
  %218 = vmatpush.bf16.msra.mxu0 %v181
  %219 = vmatpush.bf16.msra.mxu0 %v180
  %220 = vmatmul.bf16.gmra.mxu0 %v112
  %v221 = vpop.f32.mrf.mxu0
  %v222 = vadd.f32 0.0, %v221
  %v223 = vpop.f32.mrf.mxu0
  %224 = vdwg.mxu0
  %225 = vmatpush.bf16.msra.mxu0 %v195
  %226 = vmatpush.bf16.msra.mxu0 %v194
  %227 = vmatpush.bf16.msra.mxu0 %v193
  %228 = vmatpush.bf16.msra.mxu0 %v192
  %229 = vmatpush.bf16.msra.mxu0 %v191
  %230 = vmatpush.bf16.msra.mxu0 %v190
  %231 = vmatpush.bf16.msra.mxu0 %v189
  %232 = vmatpush.bf16.msra.mxu0 %v188
  %233 = vmatmul.bf16.gmra.mxu0 %v113
  %v234 = vpop.f32.mrf.mxu0
  %v235 = vadd.f32 %v222, %v234
  %v236 = vpop.f32.mrf.mxu0
  %237 = vdwg.mxu0
  %v238 = vadd.f32 %v76, %v235
  %vm239 = vcmask 254976
  %240 = vst.msk [vmem:[#allocation2] sm:$0x3] %vm239, %v238
  // Predicated region
  $region86: #{critic_forward.5} parent=0 // pred_check
    %p241 = pneg %p70
  $region87: #{critic_forward.5} parent=0 // pred_check_branch
    %243 = sbr.rel (%p241) target = $region89
  $region88: #{critic_forward.5} parent=0 // pred_region
    %v244 = vld [vmem:[#allocation2] sm:$0x3]
    %v245 = vld [vmem:[%s3] sm:$0x1]
    %v247 = vperm.slane %v245, 0
    %v249 = vadd.f32 %v244, %v247
    %v250 = vsel %vm239, %v249, 0.0
    %251 = vadd.xlane.f32.xlu0 %v250
    %v252 = vpop.xlane.xlu0 %251
    %v253 = vrcp.pop 32.0
    %v254 = vmul.f32 32.0, %v253
    %v255 = vsub.f32 1.0, %v254
    %v256 = vmul.f32 %v253, %v255
    %v257 = vadd.f32 %v253, %v256
    %vm258 = vweird.f32 %v253
    %v259 = vsel %vm258, %v253, %v257
    %v260 = vmul.f32 %v252, %v259
    %v261 = vsub.f32 %v249, %v260
    %v262 = vmul.f32 %v261, %v261
    %v263 = vsel %vm239, %v262, 0.0
    %264 = vadd.xlane.f32.xlu0 %v263
    %v265 = vpop.xlane.xlu0 %264
    %v266 = vmul.f32 %v265, %v259
    %v267 = vadd.f32 %v266, 1e-05
    %v268 = vrsqrt.pop %v267
    %v269 = vmul.f32 %v268, %v267
    %v270 = vmul.f32 %v269, %v268
    %v271 = vmul.f32 0.5, %v270
    %v272 = vsub.f32 1.5, %v271
    %v273 = vmul.f32 %v268, %v272
    %vm274 = vweird.f32 %v267
    %vm275 = vweird.f32 %v268
    %vm276 = vmor %vm274, %vm275
    %v277 = vsel %vm276, %v268, %v273
    %v278 = vmul.f32 %v261, %v277
    %v279 = vld [vmem:[%s4] sm:$0x1]
    %v281 = vperm.slane %v279, 0
    %v283 = vmul.f32 %v278, %v281
    %v284 = vld [vmem:[%s5] sm:$0x1]
    %v286 = vperm.slane %v284, 0
    %v288 = vadd.f32 %v283, %v286
    %v289 = vpack.c.bf16 %v288, %v288
    %v290 = vld [vmem:[%s1] sm:$0x1]
    %v291 = vld [vmem:[%s6] sm:$0xf]
    %v292 = vld [vmem:[%s6 + $0x4] sm:$0xf]
    %v293 = vld [vmem:[%s6 + $0x8] sm:$0xf]
    %v294 = vld [vmem:[%s6 + $0xc] sm:$0xf]
    %v295 = vld [vmem:[%s7] sm:$0x3]
    %vm296 = vcmask 31744
    %v298 = vsel %vm296, %v290, 0
    %vm300 = vcmask 1041408
    %v302 = vsel %vm300, %v295, 0
    %304 = vmatpush.bf16.msra.mxu0 0
    %305 = vmatpush.bf16.msra.mxu0 0
    %306 = vmatpush.bf16.msra.mxu0 0
    %307 = vmatpush.bf16.msra.mxu0 0
    %308 = vmatpush.bf16.msra.mxu0 0
    %309 = vmatpush.bf16.msra.mxu0 0
    %310 = vmatpush.bf16.msra.mxu0 0
    %311 = vmatpush.bf16.msra.mxu0 %v302
    %312 = vmatmul.bf16.gmra.mxu0 %v298
    %v313 = vpop.f32.mrf.mxu0
    %v314 = vadd.f32 0.0, %v313
    %v315 = vpop.f32.mrf.mxu0
    %316 = vdwg.mxu0
    %v321 = vunpack.c.l.b16 %v291
    %v322 = vunpack.c.l.b16 %v292
    %v323 = vunpack.c.l.b16 %v293
    %v324 = vunpack.c.l.b16 %v294
    %v325 = vpack.c.b16 %v322, %v321
    %v326 = vpack.c.b16 %v324, %v323
    %vm329 = vcmask 261120
    %v331 = vsel %vm329, %v289, 0
    %333 = vmatpush.bf16.msra.mxu0 0
    %334 = vmatpush.bf16.msra.mxu0 0
    %335 = vmatpush.bf16.msra.mxu0 0
    %336 = vmatpush.bf16.msra.mxu0 0
    %337 = vmatpush.bf16.msra.mxu0 0
    %338 = vmatpush.bf16.msra.mxu0 0
    %339 = vmatpush.bf16.msra.mxu0 %v326
    %340 = vmatpush.bf16.msra.mxu0 %v325
    %341 = vmatmul.bf16.gmra.mxu0 %v331
    %v342 = vpop.f32.mrf.mxu0
    %v343 = vadd.f32 %v314, %v342
    %v344 = vpop.f32.mrf.mxu0
    %345 = vdwg.mxu0
    %v346 = vld [vmem:[%s8] sm:$0x1]
    %v348 = vperm.slane %v346, 0
    %v350 = vadd.f32 %v343, %v348
    %v351 = vmax.f32 %v350, 0.0
    %v352 = vpack.c.bf16 %v351, %v351
    %v353 = vld [vmem:[%s9] sm:$0xf]
    %v354 = vld [vmem:[%s9 + $0x4] sm:$0xf]
    %v355 = vld [vmem:[%s9 + $0x8] sm:$0xf]
    %v356 = vld [vmem:[%s9 + $0xc] sm:$0xf]
    %v357 = vld [vmem:[%s10] sm:$0x1]
    %v359 = vperm.slane %v357, 0
    %v365 = vunpack.c.l.b16 %v353
    %v366 = vunpack.c.l.b16 %v354
    %v367 = vunpack.c.l.b16 %v355
    %v368 = vunpack.c.l.b16 %v356
    %v369 = vpack.c.b16 %v366, %v365
    %v370 = vpack.c.b16 %v368, %v367
    %v374 = vsel %vm329, %v352, 0
    %376 = vmatpush.bf16.msra.mxu0 0
    %377 = vmatpush.bf16.msra.mxu0 0
    %378 = vmatpush.bf16.msra.mxu0 0
    %379 = vmatpush.bf16.msra.mxu0 0
    %380 = vmatpush.bf16.msra.mxu0 0
    %381 = vmatpush.bf16.msra.mxu0 0
    %382 = vmatpush.bf16.msra.mxu0 %v370
    %383 = vmatpush.bf16.msra.mxu0 %v369
    %384 = vmatmul.bf16.gmra.mxu0 %v374
    %v385 = vpop.f32.mrf.mxu0
    %v386 = vadd.f32 %v359, %v385
    %v387 = vpop.f32.mrf.mxu0
    %388 = vdwg.mxu0
    %v389 = vmax.f32 %v386, 0.0
    %v390 = vld [vmem:[%s11] sm:$0x1]
    %v392 = vperm.slane %v390, 0
    %v394 = vmul.f32 %v389, %v392
    %v395 = vsel %vm239, %v394, 0.0
    %396 = vadd.xlane.f32.xlu0 %v395
    %v397 = vpop.xlane.xlu0 %396
    %v398 = vld [vmem:[#allocation3] sm:$0x1]
    %v400 = vperm.slane %v398, 0
    %v402 = vadd.f32 %v397, %v400
    %v403 = vld [vmem:[%s13] sm:$0xf]
    %v404 = vld [vmem:[%s13 + $0x4] sm:$0xf]
    %v405 = vld [vmem:[%s13 + $0x8] sm:$0xf]
    %v406 = vld [vmem:[%s13 + $0xc] sm:$0xf]
    %v407 = vld [vmem:[%s14] sm:$0x3]
    %v409 = vsel %vm300, %v407, 0
    %411 = vmatpush.bf16.msra.mxu0 0
    %412 = vmatpush.bf16.msra.mxu0 0
    %413 = vmatpush.bf16.msra.mxu0 0
    %414 = vmatpush.bf16.msra.mxu0 0
    %415 = vmatpush.bf16.msra.mxu0 0
    %416 = vmatpush.bf16.msra.mxu0 0
    %417 = vmatpush.bf16.msra.mxu0 0
    %418 = vmatpush.bf16.msra.mxu0 %v409
    %419 = vmatmul.bf16.gmra.mxu0 %v298
    %v420 = vpop.f32.mrf.mxu0
    %v421 = vadd.f32 0.0, %v420
    %v422 = vpop.f32.mrf.mxu0
    %423 = vdwg.mxu0
    %v428 = vunpack.c.l.b16 %v403
    %v429 = vunpack.c.l.b16 %v404
    %v430 = vunpack.c.l.b16 %v405
    %v431 = vunpack.c.l.b16 %v406
    %v432 = vpack.c.b16 %v429, %v428
    %v433 = vpack.c.b16 %v431, %v430
    %436 = vmatpush.bf16.msra.mxu0 0
    %437 = vmatpush.bf16.msra.mxu0 0
    %438 = vmatpush.bf16.msra.mxu0 0
    %439 = vmatpush.bf16.msra.mxu0 0
    %440 = vmatpush.bf16.msra.mxu0 0
    %441 = vmatpush.bf16.msra.mxu0 0
    %442 = vmatpush.bf16.msra.mxu0 %v433
    %443 = vmatpush.bf16.msra.mxu0 %v432
    %444 = vmatmul.bf16.gmra.mxu0 %v331
    %v445 = vpop.f32.mrf.mxu0
    %v446 = vadd.f32 %v421, %v445
    %v447 = vpop.f32.mrf.mxu0
    %448 = vdwg.mxu0
    %v449 = vld [vmem:[%s15] sm:$0x1]
    %v451 = vperm.slane %v449, 0
    %v453 = vadd.f32 %v446, %v451
    %v454 = vmax.f32 %v453, 0.0
    %v455 = vpack.c.bf16 %v454, %v454
    %v456 = vld [vmem:[%s16] sm:$0xf]
    %v457 = vld [vmem:[%s16 + $0x4] sm:$0xf]
    %v458 = vld [vmem:[%s16 + $0x8] sm:$0xf]
    %v459 = vld [vmem:[%s16 + $0xc] sm:$0xf]
    %v460 = vld [vmem:[%s17] sm:$0x1]
    %v462 = vperm.slane %v460, 0
    %v468 = vunpack.c.l.b16 %v456
    %v469 = vunpack.c.l.b16 %v457
    %v470 = vunpack.c.l.b16 %v458
    %v471 = vunpack.c.l.b16 %v459
    %v472 = vpack.c.b16 %v469, %v468
    %v473 = vpack.c.b16 %v471, %v470
    %v477 = vsel %vm329, %v455, 0
    %479 = vmatpush.bf16.msra.mxu0 0
    %480 = vmatpush.bf16.msra.mxu0 0
    %481 = vmatpush.bf16.msra.mxu0 0
    %482 = vmatpush.bf16.msra.mxu0 0
    %483 = vmatpush.bf16.msra.mxu0 0
    %484 = vmatpush.bf16.msra.mxu0 0
    %485 = vmatpush.bf16.msra.mxu0 %v473
    %486 = vmatpush.bf16.msra.mxu0 %v472
    %487 = vmatmul.bf16.gmra.mxu0 %v477
    %v488 = vpop.f32.mrf.mxu0
    %v489 = vadd.f32 %v462, %v488
    %v490 = vpop.f32.mrf.mxu0
    %491 = vdwg.mxu0
    %v492 = vmax.f32 %v489, 0.0
    %v493 = vld [vmem:[%s18] sm:$0x1]
    %v495 = vperm.slane %v493, 0
    %v497 = vmul.f32 %v492, %v495
    %v498 = vsel %vm239, %v497, 0.0
    %499 = vadd.xlane.f32.xlu0 %v498
    %v500 = vpop.xlane.xlu0 %499
    %v501 = vld [vmem:[#allocation4] sm:$0x1]
    %v503 = vperm.slane %v501, 0
    %v505 = vadd.f32 %v500, %v503
    %vm506 = vcmask 1024
    %507 = vst.msk [vmem:[%s20] sm:$0x3] %vm506, %v402
    %509 = vrot.lane.b32.xlu0 %v505, 1
    %v510 = vpop.permute.xlu0 %509
    %vm512 = vcmask 9224
    %513 = vst.msk [vmem:[%s20] sm:$0x3] %vm512, %v510
  $region89: #{critic_forward.5} parent=0 // pred_fallthru
    _
  // Predicated region
  $region90: #{critic_forward.5} parent=0 // pred_check
    _
  $region91: #{critic_forward.5} parent=0 // pred_check_branch
    %515 = sbr.rel (0) target = $region93
  $region92: #{critic_forward.5} parent=0 // pred_region
    _
  $region93: #{critic_forward.5} parent=0 // pred_fallthru
    _
  // Predicated region
  $region94: #{critic_forward.5} parent=0 // pred_check
    _
  $region95: #{critic_forward.5} parent=0 // pred_check_branch
    %517 = sbr.rel (0) target = $region97
  $region96: #{critic_forward.5} parent=0 // pred_region
    _
  $region97: #{critic_forward.5} parent=0 // pred_fallthru
    _

</llo_original>
